<compile_context>
chip_gen: v7x
topology: tpu7x:2x2x1
jax: 0.10.0
libtpu: 0.0.40
codegen_flags: <defaults>
</compile_context>

<pallas_src>
import functools

import jax
import jax.numpy as jnp
from jax import lax
from jax.experimental import pallas as pl
from jax.experimental.pallas import tpu as pltpu


def _round_up(x, m):
    return ((x + m - 1) // m) * m


# ----------------------------------------------------------------------------
# CrossAttention kernel
# ----------------------------------------------------------------------------
def cross_attention_kernel(q_ref, k_ref, v_ref,
                           wq_ref, bq_ref, wk_ref, bk_ref, wv_ref, bv_ref,
                           wo_ref, bo_ref,
                           o_ref,
                           qp_ref, kp_ref, vp_ref, ctx_ref,
                           *, num_heads, hd_pad):
    q_tile_id = pl.program_id(1)

    # K/V projections: once per batch element (q-tile axis is innermost), kept
    # in VMEM scratch in the MXU operand dtype and reused by every q-row tile.
    @pl.when(q_tile_id == 0)
    def _():
        K = jnp.dot(k_ref[0], wk_ref[...],
                    preferred_element_type=jnp.float32) + bk_ref[...]
        V = jnp.dot(v_ref[0], wv_ref[...],
                    preferred_element_type=jnp.float32) + bv_ref[...]
        kp_ref[...] = K.astype(kp_ref.dtype)
        vp_ref[...] = V.astype(vp_ref.dtype)

    # Q projection for this row tile; 1/sqrt(head_dim) is folded into Wq/bq.
    Q = jnp.dot(q_ref[0], wq_ref[...],
                preferred_element_type=jnp.float32) + bq_ref[...]
    qp_ref[...] = Q.astype(qp_ref.dtype)

    # Contract head_dim of both operands: Q @ K^T with no explicit K transpose.
    dn_qk = (((1,), (1,)), ((), ()))

    # Per-head attention. hd_pad is a multiple of 128, so every slice below is
    # a 128-aligned static lane slice of a VMEM scratch slab (no relayouts),
    # and each iteration's intermediates die at the ctx_ref store.
    for h in range(num_heads):
        lo = h * hd_pad
        hi = lo + hd_pad
        Qh = qp_ref[:, lo:hi]                      # (TQ, hd_pad)
        Kh = kp_ref[:, lo:hi]                      # (Lk, hd_pad)
        Vh = vp_ref[:, lo:hi]                      # (Lk, hd_pad)

        scores = lax.dot_general(Qh, Kh, dn_qk,
                                 preferred_element_type=jnp.float32)  # (TQ, Lk)

        # Softmax strictly in f32; the normalization divide uses the EUP
        # approximate reciprocal (separate issue slot) instead of a VALU divide.
        m = jnp.max(scores, axis=-1, keepdims=True)
        e = jnp.exp(scores - m)
        inv = pl.reciprocal(jnp.sum(e, axis=-1, keepdims=True), approx=True)
        attn = (e * inv).astype(vp_ref.dtype)

        ctx_ref[:, lo:hi] = jnp.dot(
            attn, Vh, preferred_element_type=jnp.float32).astype(ctx_ref.dtype)

    # ONE fused full-width output projection (contraction = num_heads*hd_pad)
    # instead of num_heads tiny head_dim-wide accumulations.
    out = jnp.dot(ctx_ref[...], wo_ref[...],
                  preferred_element_type=jnp.float32) + bo_ref[...]
    o_ref[0] = out.astype(o_ref.dtype)


def cross_attention_pallas(query, key, value, params, num_heads, *, q_tile=None):
    B, Lq, hidden = query.shape
    _, Lk, k_dim = key.shape
    _, _, v_dim = value.shape
    assert hidden % num_heads == 0, "hidden_dim must be divisible by num_heads"
    head_dim = hidden // num_heads

    wq, bq, wk, bk, wv, bv, wo, bo = params

    # Fold the attention scale into the Q projection (zero in-kernel work).
    scale = jnp.asarray(1.0 / (head_dim ** 0.5), wq.dtype)
    wq = wq * scale
    bq = bq * scale

    # Zero-pad each head to a 128-lane boundary (wrapper-side, one-time weight
    # reshape; zero pads contribute nothing to any contraction -> exact).
    hd_pad = max(128, _round_up(head_dim, 128))
    Hp = num_heads * hd_pad
    pad_d = hd_pad - head_dim

    def pad_proj(w, b):
        w3 = jnp.pad(w.reshape(w.shape[0], num_heads, head_dim),
                     ((0, 0), (0, 0), (0, pad_d)))
        b3 = jnp.pad(b.reshape(1, num_heads, head_dim),
                     ((0, 0), (0, 0), (0, pad_d)))
        return w3.reshape(w.shape[0], Hp), b3.reshape(1, Hp)

    wq_p, bq_p = pad_proj(wq, bq)
    wk_p, bk_p = pad_proj(wk, bk)
    wv_p, bv_p = pad_proj(wv, bv)

    # Wo: zero rows for the padded head lanes; pad output columns to a 128
    # multiple so the output store is lane-dense (pad lanes sliced off below).
    out_pad = _round_up(hidden, 128)
    wo3 = jnp.pad(wo.reshape(num_heads, head_dim, hidden),
                  ((0, 0), (0, pad_d), (0, out_pad - hidden)))
    wo_p = wo3.reshape(Hp, out_pad)
    bo_p = jnp.pad(bo.reshape(1, hidden), ((0, 0), (0, out_pad - hidden)))

    # Row tile over the query length (innermost grid axis).
    if q_tile is None:
        q_tile = Lq if Lq <= 512 else next(
            (t for t in (512, 256, 128, 64, 32, 16, 8) if Lq % t == 0), Lq)
    assert Lq % q_tile == 0
    nq = Lq // q_tile

    op_dtype = query.dtype
    kernel = functools.partial(cross_attention_kernel,
                               num_heads=num_heads, hd_pad=hd_pad)

    def resident(shape):
        return pl.BlockSpec(shape, lambda b, i: (0, 0))   # VMEM-resident weights

    grid_spec = pltpu.PrefetchScalarGridSpec(
        num_scalar_prefetch=0,
        grid=(B, nq),
        in_specs=[
            pl.BlockSpec((1, q_tile, hidden), lambda b, i: (b, i, 0)),   # q tile
            pl.BlockSpec((1, Lk, k_dim), lambda b, i: (b, 0, 0)),        # k (per batch)
            pl.BlockSpec((1, Lk, v_dim), lambda b, i: (b, 0, 0)),        # v (per batch)
            resident((hidden, Hp)), resident((1, Hp)),                   # wq, bq
            resident((k_dim, Hp)), resident((1, Hp)),                    # wk, bk
            resident((v_dim, Hp)), resident((1, Hp)),                    # wv, bv
            resident((Hp, out_pad)), resident((1, out_pad)),             # wo, bo
        ],
        out_specs=pl.BlockSpec((1, q_tile, out_pad), lambda b, i: (b, i, 0)),
        scratch_shapes=[
            pltpu.VMEM((q_tile, Hp), op_dtype),   # projected Q tile
            pltpu.VMEM((Lk, Hp), op_dtype),       # projected K (cached per batch)
            pltpu.VMEM((Lk, Hp), op_dtype),       # projected V (cached per batch)
            pltpu.VMEM((q_tile, Hp), op_dtype),   # per-head context slab
        ],
    )

    # Rough VMEM budget: resident weights + double-buffered blocks + scratch,
    # with headroom; capped at 64 MiB so the plan also fits v7x.
    def nbytes(shape, dt):
        n = 1
        for s in shape:
            n *= s
        return n * jnp.dtype(dt).itemsize

    need = (nbytes((hidden, Hp), wq_p.dtype) + nbytes((k_dim, Hp), wk_p.dtype)
            + nbytes((v_dim, Hp), wv_p.dtype) + nbytes((Hp, out_pad), wo_p.dtype)
            + 4 * nbytes((1, Hp), bq_p.dtype)
            + 2 * (nbytes((q_tile, hidden), op_dtype)
                   + nbytes((Lk, k_dim), op_dtype)
                   + nbytes((Lk, v_dim), op_dtype)
                   + nbytes((q_tile, out_pad), op_dtype))
            + 2 * nbytes((q_tile, Hp), op_dtype)
            + 2 * nbytes((Lk, Hp), op_dtype))
    vmem_limit = int(min(64 * 2 ** 20, max(32 * 2 ** 20, 4 * need)))

    out_padded = pl.pallas_call(
        kernel,
        out_shape=jax.ShapeDtypeStruct((B, Lq, out_pad), query.dtype),
        grid_spec=grid_spec,
        compiler_params=pltpu.CompilerParams(
            # batch axis sharded across TensorCores (v7x); q-tile axis is
            # sequential so the per-batch K/V scratch caching stays valid.
            dimension_semantics=("parallel", "arbitrary"),
            vmem_limit_bytes=vmem_limit,
        ),
    )(query, key, value, wq_p, bq_p, wk_p, bk_p, wv_p, bv_p, wo_p, bo_p)

    return out_padded[..., :hidden]


def cross_attention_ref(query, key, value, params, num_heads):
    """Plain-JAX reference mirroring the PyTorch forward (mask=None, eval)."""
    wq, bq, wk, bk, wv, bv, wo, bo = params
    B, Lq, hidden = query.shape
    Lk = key.shape[1]
    head_dim = hidden // num_heads

    Q = query @ wq + bq
    K = key @ wk + bk
    V = value @ wv + bv

    Q = Q.reshape(B, Lq, num_heads, head_dim).transpose(0, 2, 1, 3)
    K = K.reshape(B, Lk, num_heads, head_dim).transpose(0, 2, 1, 3)
    V = V.reshape(B, Lk, num_heads, head_dim).transpose(0, 2, 1, 3)

    scores = jnp.einsum('bhqd,bhkd->bhqk', Q, K) / jnp.sqrt(jnp.float32(head_dim))
    attn = jax.nn.softmax(scores, axis=-1)
    ctx = jnp.einsum('bhqk,bhkd->bhqd', attn, V)
    ctx = ctx.transpose(0, 2, 1, 3).reshape(B, Lq, hidden)
    return ctx @ wo + bo


# ----------------------------------------------------------------------------
# EpsilonNet output head: hidden2input + masked eps residuals
# ----------------------------------------------------------------------------
def epsilon_head_kernel(h_noisy_ref, next_h_ref, w_ref, b_ref,
                        x_noisy_ref, next_x_ref, mask_ref,
                        eps_h_ref, eps_x_ref):
    mask = mask_ref[...] != 0                                   # (N, 1)
    next_h = jnp.dot(next_h_ref[...], w_ref[...],
                     preferred_element_type=jnp.float32) + b_ref[...]
    eps_h = next_h - h_noisy_ref[...].astype(jnp.float32)
    eps_h_ref[...] = jnp.where(mask, eps_h, 0.0).astype(eps_h_ref.dtype)

    eps_x = next_x_ref[...].astype(jnp.float32) - x_noisy_ref[...].astype(jnp.float32)
    eps_x_ref[...] = jnp.where(mask, eps_x, 0.0).astype(eps_x_ref.dtype)


def epsilon_net_head_pallas(h_noisy, x_noisy, next_h, next_x, w, b, mask_generate):
    N, input_size = h_noisy.shape
    n_channel = x_noisy.shape[1]
    x2 = x_noisy.reshape(N, n_channel * 3)
    nx2 = next_x.reshape(N, n_channel * 3)
    mask = mask_generate.astype(jnp.int32).reshape(N, 1)

    vmem = lambda: pl.BlockSpec(memory_space=pltpu.MemorySpace.VMEM)
    eps_h, eps_x2 = pl.pallas_call(
        epsilon_head_kernel,
        out_shape=(jax.ShapeDtypeStruct((N, input_size), h_noisy.dtype),
                   jax.ShapeDtypeStruct((N, n_channel * 3), x_noisy.dtype)),
        in_specs=[vmem() for _ in range(7)],
        out_specs=(vmem(), vmem()),
    )(h_noisy, next_h, w, b, x2, nx2, mask)
    return eps_h, eps_x2.reshape(N, n_channel, 3)


def epsilon_net_head_ref(h_noisy, x_noisy, next_h, next_x, w, b, mask_generate):
    nh = next_h @ w + b
    eps_h = jnp.where(mask_generate[:, None], nh - h_noisy, 0.0)
    eps_x = jnp.where(mask_generate[:, None, None], next_x - x_noisy, 0.0)
    return eps_h, eps_x


# ----------------------------------------------------------------------------
if __name__ == "__main__":
    key0 = jax.random.PRNGKey(0)
    keys = jax.random.split(key0, 20)
    scale = 0.05

    # ---- CrossAttention block (small shapes consistent with the module) ----
    B, Lq, Lk = 2, 8, 8
    hidden_dim, k_dim, v_dim, num_heads = 32, 16, 24, 4

    wq = scale * jax.random.normal(keys[0], (hidden_dim, hidden_dim), jnp.float32)
    bq = scale * jax.random.normal(keys[1], (1, hidden_dim), jnp.float32)
    wk = scale * jax.random.normal(keys[2], (k_dim, hidden_dim), jnp.float32)
    bk = scale * jax.random.normal(keys[3], (1, hidden_dim), jnp.float32)
    wv = scale * jax.random.normal(keys[4], (v_dim, hidden_dim), jnp.float32)
    bv = scale * jax.random.normal(keys[5], (1, hidden_dim), jnp.float32)
    wo = scale * jax.random.normal(keys[6], (hidden_dim, hidden_dim), jnp.float32)
    bo = scale * jax.random.normal(keys[7], (1, hidden_dim), jnp.float32)
    params = (wq, bq, wk, bk, wv, bv, wo, bo)

    query = jax.random.normal(keys[8], (B, Lq, hidden_dim), jnp.float32)
    key_in = jax.random.normal(keys[9], (B, Lk, k_dim), jnp.float32)
    value_in = jax.random.normal(keys[10], (B, Lk, v_dim), jnp.float32)

    out = cross_attention_pallas(query, key_in, value_in, params, num_heads)
    out = jax.block_until_ready(out)
    ref = cross_attention_ref(query, key_in, value_in, params, num_heads)
    assert out.shape == (B, Lq, hidden_dim)
    # Tolerance covers the EUP approximate reciprocal in the softmax norm.
    assert jnp.allclose(out, ref, atol=2e-3, rtol=2e-3), "cross-attention mismatch"

    # ---- EpsilonNet output head (hidden2input + masked eps residuals) ----
    N, input_size, hidden_size, n_channel = 16, 16, 32, 14
    h_noisy = jax.random.normal(keys[11], (N, input_size), jnp.float32)
    x_noisy = jax.random.normal(keys[12], (N, n_channel, 3), jnp.float32)
    next_h = jax.random.normal(keys[13], (N, hidden_size), jnp.float32)   # encoder output (TODO(synk): AMEGNN)
    next_x = jax.random.normal(keys[14], (N, n_channel, 3), jnp.float32)
    w_h2i = scale * jax.random.normal(keys[15], (hidden_size, input_size), jnp.float32)
    b_h2i = scale * jax.random.normal(keys[16], (1, input_size), jnp.float32)
    mask_generate = jax.random.uniform(keys[17], (N,)) > 0.5

    eps_h, eps_x = epsilon_net_head_pallas(h_noisy, x_noisy, next_h, next_x,
                                           w_h2i, b_h2i, mask_generate)
    eps_h = jax.block_until_ready(eps_h)
    eps_x = jax.block_until_ready(eps_x)
    eps_h_ref, eps_x_ref = epsilon_net_head_ref(h_noisy, x_noisy, next_h, next_x,
                                                w_h2i, b_h2i, mask_generate)
    assert jnp.allclose(eps_h, eps_h_ref, atol=1e-4, rtol=1e-4), "eps_H mismatch"
    assert jnp.allclose(eps_x, eps_x_ref, atol=1e-5, rtol=1e-5), "eps_X mismatch"

    print("KERNEL_OK")
</pallas_src>

<mosaic_0001>
module attributes {stable_mosaic.version = 11 : i64} {
  func.func @cross_attention_kernel(%arg0: i32, %arg1: i32, %arg2: memref<1x8x32xf32, #tpu.memory_space<vmem>>, %arg3: memref<1x8x16xf32, #tpu.memory_space<vmem>>, %arg4: memref<1x8x24xf32, #tpu.memory_space<vmem>>, %arg5: memref<32x512xf32, #tpu.memory_space<vmem>>, %arg6: memref<1x512xf32, #tpu.memory_space<vmem>>, %arg7: memref<16x512xf32, #tpu.memory_space<vmem>>, %arg8: memref<1x512xf32, #tpu.memory_space<vmem>>, %arg9: memref<24x512xf32, #tpu.memory_space<vmem>>, %arg10: memref<1x512xf32, #tpu.memory_space<vmem>>, %arg11: memref<512x128xf32, #tpu.memory_space<vmem>>, %arg12: memref<1x128xf32, #tpu.memory_space<vmem>>, %arg13: memref<1x8x128xf32, #tpu.memory_space<vmem>>, %arg14: memref<8x512xf32, #tpu.memory_space<vmem>>, %arg15: memref<8x512xf32, #tpu.memory_space<vmem>>, %arg16: memref<8x512xf32, #tpu.memory_space<vmem>>, %arg17: memref<8x512xf32, #tpu.memory_space<vmem>>) attributes {dimension_semantics = [#tpu.dimension_semantics<parallel>, #tpu.dimension_semantics<arbitrary>], iteration_bounds = array<i64: 2, 1>, scalar_prefetch = 0 : i64, scratch_operands = 4 : i64, tpu.core_type = #tpu.core_type<tc>, window_params = [{transform_indices = @transform_0, window_bounds = array<i64: 1, 8, 32>}, {transform_indices = @transform_1, window_bounds = array<i64: 1, 8, 16>}, {transform_indices = @transform_2, window_bounds = array<i64: 1, 8, 24>}, {pipeline_mode = #tpu.pipeline_mode<synchronous>, transform_indices = @transform_3, window_bounds = array<i64: 32, 512>}, {pipeline_mode = #tpu.pipeline_mode<synchronous>, transform_indices = @transform_4, window_bounds = array<i64: 1, 512>}, {pipeline_mode = #tpu.pipeline_mode<synchronous>, transform_indices = @transform_5, window_bounds = array<i64: 16, 512>}, {pipeline_mode = #tpu.pipeline_mode<synchronous>, transform_indices = @transform_6, window_bounds = array<i64: 1, 512>}, {pipeline_mode = #tpu.pipeline_mode<synchronous>, transform_indices = @transform_7, window_bounds = array<i64: 24, 512>}, {pipeline_mode = #tpu.pipeline_mode<synchronous>, transform_indices = @transform_8, window_bounds = array<i64: 1, 512>}, {pipeline_mode = #tpu.pipeline_mode<synchronous>, transform_indices = @transform_9, window_bounds = array<i64: 512, 128>}, {pipeline_mode = #tpu.pipeline_mode<synchronous>, transform_indices = @transform_10, window_bounds = array<i64: 1, 128>}, {transform_indices = @transform_11, window_bounds = array<i64: 1, 8, 128>}]} {
    %c0_i32 = arith.constant 0 : i32
    %0 = arith.cmpi eq, %arg1, %c0_i32 : i32
    %1 = arith.extui %0 : i1 to i32
    %c0_i32_0 = arith.constant 0 : i32
    %2 = arith.cmpi ne, %1, %c0_i32_0 : i32
    scf.if %2 {
      %c0_64 = arith.constant 0 : index
      %c0_65 = arith.constant 0 : index
      %c0_66 = arith.constant 0 : index
      %84 = vector.load %arg3[%c0_64, %c0_65, %c0_66] : memref<1x8x16xf32, #tpu.memory_space<vmem>>, vector<1x8x16xf32>
      %85 = vector.shape_cast %84 : vector<1x8x16xf32> to vector<8x16xf32>
      %c0_67 = arith.constant 0 : index
      %c0_68 = arith.constant 0 : index
      %86 = vector.load %arg7[%c0_67, %c0_68] : memref<16x512xf32, #tpu.memory_space<vmem>>, vector<16x512xf32>
      %cst_69 = arith.constant dense<0.000000e+00> : vector<8x512xf32>
      %87 = tpu.matmul %85, %86, %cst_69 {dimension_numbers = #tpu.dot_dimension_numbers<[1], [0], [0], [1], [0, 0, 1, 1], [], []>} : vector<8x16xf32>, vector<16x512xf32>, vector<8x512xf32> -> vector<8x512xf32>
      %c0_70 = arith.constant 0 : index
      %c0_71 = arith.constant 0 : index
      %88 = vector.load %arg8[%c0_70, %c0_71] : memref<1x512xf32, #tpu.memory_space<vmem>>, vector<1x512xf32>
      %89 = vector.broadcast %88 : vector<1x512xf32> to vector<8x512xf32>
      %90 = arith.addf %87, %89 : vector<8x512xf32>
      %c0_72 = arith.constant 0 : index
      %c0_73 = arith.constant 0 : index
      %c0_74 = arith.constant 0 : index
      %91 = vector.load %arg4[%c0_72, %c0_73, %c0_74] : memref<1x8x24xf32, #tpu.memory_space<vmem>>, vector<1x8x24xf32>
      %92 = vector.shape_cast %91 : vector<1x8x24xf32> to vector<8x24xf32>
      %c0_75 = arith.constant 0 : index
      %c0_76 = arith.constant 0 : index
      %93 = vector.load %arg9[%c0_75, %c0_76] : memref<24x512xf32, #tpu.memory_space<vmem>>, vector<24x512xf32>
      %cst_77 = arith.constant dense<0.000000e+00> : vector<8x512xf32>
      %94 = tpu.matmul %92, %93, %cst_77 {dimension_numbers = #tpu.dot_dimension_numbers<[1], [0], [0], [1], [0, 0, 1, 1], [], []>} : vector<8x24xf32>, vector<24x512xf32>, vector<8x512xf32> -> vector<8x512xf32>
      %c0_78 = arith.constant 0 : index
      %c0_79 = arith.constant 0 : index
      %95 = vector.load %arg10[%c0_78, %c0_79] : memref<1x512xf32, #tpu.memory_space<vmem>>, vector<1x512xf32>
      %96 = vector.broadcast %95 : vector<1x512xf32> to vector<8x512xf32>
      %97 = arith.addf %94, %96 : vector<8x512xf32>
      %c0_80 = arith.constant 0 : index
      %c0_81 = arith.constant 0 : index
      %98 = vector.load %arg15[%c0_80, %c0_81] : memref<8x512xf32, #tpu.memory_space<vmem>>, vector<8x512xf32>
      tpu.vector_store %arg15[%c0_80, %c0_81], %90 {strides = array<i32>} : memref<8x512xf32, #tpu.memory_space<vmem>>, vector<8x512xf32>,
      %c0_82 = arith.constant 0 : index
      %c0_83 = arith.constant 0 : index
      %99 = vector.load %arg16[%c0_82, %c0_83] : memref<8x512xf32, #tpu.memory_space<vmem>>, vector<8x512xf32>
      tpu.vector_store %arg16[%c0_82, %c0_83], %97 {strides = array<i32>} : memref<8x512xf32, #tpu.memory_space<vmem>>, vector<8x512xf32>,
    } else {
    }
    %c0 = arith.constant 0 : index
    %c0_1 = arith.constant 0 : index
    %c0_2 = arith.constant 0 : index
    %3 = vector.load %arg2[%c0, %c0_1, %c0_2] : memref<1x8x32xf32, #tpu.memory_space<vmem>>, vector<1x8x32xf32>
    %4 = vector.shape_cast %3 : vector<1x8x32xf32> to vector<8x32xf32>
    %c0_3 = arith.constant 0 : index
    %c0_4 = arith.constant 0 : index
    %5 = vector.load %arg5[%c0_3, %c0_4] : memref<32x512xf32, #tpu.memory_space<vmem>>, vector<32x512xf32>
    %cst = arith.constant dense<0.000000e+00> : vector<8x512xf32>
    %6 = tpu.matmul %4, %5, %cst {dimension_numbers = #tpu.dot_dimension_numbers<[1], [0], [0], [1], [0, 0, 1, 1], [], []>} : vector<8x32xf32>, vector<32x512xf32>, vector<8x512xf32> -> vector<8x512xf32>
    %c0_5 = arith.constant 0 : index
    %c0_6 = arith.constant 0 : index
    %7 = vector.load %arg6[%c0_5, %c0_6] : memref<1x512xf32, #tpu.memory_space<vmem>>, vector<1x512xf32>
    %8 = vector.broadcast %7 : vector<1x512xf32> to vector<8x512xf32>
    %9 = arith.addf %6, %8 : vector<8x512xf32>
    %c0_7 = arith.constant 0 : index
    %c0_8 = arith.constant 0 : index
    %10 = vector.load %arg14[%c0_7, %c0_8] : memref<8x512xf32, #tpu.memory_space<vmem>>, vector<8x512xf32>
    tpu.vector_store %arg14[%c0_7, %c0_8], %9 {strides = array<i32>} : memref<8x512xf32, #tpu.memory_space<vmem>>, vector<8x512xf32>,
    %c0_9 = arith.constant 0 : index
    %c0_10 = arith.constant 0 : index
    %11 = vector.load %arg14[%c0_9, %c0_10] : memref<8x512xf32, #tpu.memory_space<vmem>>, vector<8x128xf32>
    %c0_11 = arith.constant 0 : index
    %c0_12 = arith.constant 0 : index
    %12 = vector.load %arg15[%c0_11, %c0_12] : memref<8x512xf32, #tpu.memory_space<vmem>>, vector<8x128xf32>
    %c0_13 = arith.constant 0 : index
    %c0_14 = arith.constant 0 : index
    %13 = vector.load %arg16[%c0_13, %c0_14] : memref<8x512xf32, #tpu.memory_space<vmem>>, vector<8x128xf32>
    %cst_15 = arith.constant dense<0.000000e+00> : vector<8x8xf32>
    %14 = tpu.matmul %11, %12, %cst_15 {dimension_numbers = #tpu.dot_dimension_numbers<[1], [1], [0], [0], [0, 0, 1, 0], [], []>} : vector<8x128xf32>, vector<8x128xf32>, vector<8x8xf32> -> vector<8x8xf32>
    %cst_16 = arith.constant dense<0xFF800000> : vector<8xf32>
    %15 = vector.multi_reduction <maximumf>, %14, %cst_16 [1] : vector<8x8xf32> to vector<8xf32>
    %16 = vector.shape_cast %15 : vector<8xf32> to vector<8x1xf32>
    %17 = vector.broadcast %16 : vector<8x1xf32> to vector<8x8xf32>
    %18 = arith.subf %14, %17 : vector<8x8xf32>
    %19 = math.exp %18 : vector<8x8xf32>
    %cst_17 = arith.constant dense<0.000000e+00> : vector<8xf32>
    %20 = vector.multi_reduction <add>, %19, %cst_17 [1] : vector<8x8xf32> to vector<8xf32>
    %21 = vector.shape_cast %20 : vector<8xf32> to vector<8x1xf32>
    %22 = tpu.reciprocal %21 {approx = true} : vector<8x1xf32> -> vector<8x1xf32>
    %23 = vector.broadcast %22 : vector<8x1xf32> to vector<8x8xf32>
    %24 = arith.mulf %19, %23 : vector<8x8xf32>
    %cst_18 = arith.constant dense<0.000000e+00> : vector<8x128xf32>
    %25 = tpu.matmul %24, %13, %cst_18 {dimension_numbers = #tpu.dot_dimension_numbers<[1], [0], [0], [1], [0, 0, 1, 1], [], []>} : vector<8x8xf32>, vector<8x128xf32>, vector<8x128xf32> -> vector<8x128xf32>
    %c0_19 = arith.constant 0 : index
    %c0_20 = arith.constant 0 : index
    %26 = vector.load %arg17[%c0_19, %c0_20] : memref<8x512xf32, #tpu.memory_space<vmem>>, vector<8x128xf32>
    tpu.vector_store %arg17[%c0_19, %c0_20], %25 {strides = array<i32>} : memref<8x512xf32, #tpu.memory_space<vmem>>, vector<8x128xf32>,
    %c0_21 = arith.constant 0 : index
    %c128 = arith.constant 128 : index
    %27 = vector.load %arg14[%c0_21, %c128] : memref<8x512xf32, #tpu.memory_space<vmem>>, vector<8x128xf32>
    %c0_22 = arith.constant 0 : index
    %c128_23 = arith.constant 128 : index
    %28 = vector.load %arg15[%c0_22, %c128_23] : memref<8x512xf32, #tpu.memory_space<vmem>>, vector<8x128xf32>
    %c0_24 = arith.constant 0 : index
    %c128_25 = arith.constant 128 : index
    %29 = vector.load %arg16[%c0_24, %c128_25] : memref<8x512xf32, #tpu.memory_space<vmem>>, vector<8x128xf32>
    %cst_26 = arith.constant dense<0.000000e+00> : vector<8x8xf32>
    %30 = tpu.matmul %27, %28, %cst_26 {dimension_numbers = #tpu.dot_dimension_numbers<[1], [1], [0], [0], [0, 0, 1, 0], [], []>} : vector<8x128xf32>, vector<8x128xf32>, vector<8x8xf32> -> vector<8x8xf32>
    %cst_27 = arith.constant dense<0xFF800000> : vector<8xf32>
    %31 = vector.multi_reduction <maximumf>, %30, %cst_27 [1] : vector<8x8xf32> to vector<8xf32>
    %32 = vector.shape_cast %31 : vector<8xf32> to vector<8x1xf32>
    %33 = vector.broadcast %32 : vector<8x1xf32> to vector<8x8xf32>
    %34 = arith.subf %30, %33 : vector<8x8xf32>
    %35 = math.exp %34 : vector<8x8xf32>
    %cst_28 = arith.constant dense<0.000000e+00> : vector<8xf32>
    %36 = vector.multi_reduction <add>, %35, %cst_28 [1] : vector<8x8xf32> to vector<8xf32>
    %37 = vector.shape_cast %36 : vector<8xf32> to vector<8x1xf32>
    %38 = tpu.reciprocal %37 {approx = true} : vector<8x1xf32> -> vector<8x1xf32>
    %39 = vector.broadcast %38 : vector<8x1xf32> to vector<8x8xf32>
    %40 = arith.mulf %35, %39 : vector<8x8xf32>
    %cst_29 = arith.constant dense<0.000000e+00> : vector<8x128xf32>
    %41 = tpu.matmul %40, %29, %cst_29 {dimension_numbers = #tpu.dot_dimension_numbers<[1], [0], [0], [1], [0, 0, 1, 1], [], []>} : vector<8x8xf32>, vector<8x128xf32>, vector<8x128xf32> -> vector<8x128xf32>
    %c0_30 = arith.constant 0 : index
    %c128_31 = arith.constant 128 : index
    %42 = vector.load %arg17[%c0_30, %c128_31] : memref<8x512xf32, #tpu.memory_space<vmem>>, vector<8x128xf32>
    tpu.vector_store %arg17[%c0_30, %c128_31], %41 {strides = array<i32>} : memref<8x512xf32, #tpu.memory_space<vmem>>, vector<8x128xf32>,
    %c0_32 = arith.constant 0 : index
    %c256 = arith.constant 256 : index
    %43 = vector.load %arg14[%c0_32, %c256] : memref<8x512xf32, #tpu.memory_space<vmem>>, vector<8x128xf32>
    %c0_33 = arith.constant 0 : index
    %c256_34 = arith.constant 256 : index
    %44 = vector.load %arg15[%c0_33, %c256_34] : memref<8x512xf32, #tpu.memory_space<vmem>>, vector<8x128xf32>
    %c0_35 = arith.constant 0 : index
    %c256_36 = arith.constant 256 : index
    %45 = vector.load %arg16[%c0_35, %c256_36] : memref<8x512xf32, #tpu.memory_space<vmem>>, vector<8x128xf32>
    %cst_37 = arith.constant dense<0.000000e+00> : vector<8x8xf32>
    %46 = tpu.matmul %43, %44, %cst_37 {dimension_numbers = #tpu.dot_dimension_numbers<[1], [1], [0], [0], [0, 0, 1, 0], [], []>} : vector<8x128xf32>, vector<8x128xf32>, vector<8x8xf32> -> vector<8x8xf32>
    %cst_38 = arith.constant dense<0xFF800000> : vector<8xf32>
    %47 = vector.multi_reduction <maximumf>, %46, %cst_38 [1] : vector<8x8xf32> to vector<8xf32>
    %48 = vector.shape_cast %47 : vector<8xf32> to vector<8x1xf32>
    %49 = vector.broadcast %48 : vector<8x1xf32> to vector<8x8xf32>
    %50 = arith.subf %46, %49 : vector<8x8xf32>
    %51 = math.exp %50 : vector<8x8xf32>
    %cst_39 = arith.constant dense<0.000000e+00> : vector<8xf32>
    %52 = vector.multi_reduction <add>, %51, %cst_39 [1] : vector<8x8xf32> to vector<8xf32>
    %53 = vector.shape_cast %52 : vector<8xf32> to vector<8x1xf32>
    %54 = tpu.reciprocal %53 {approx = true} : vector<8x1xf32> -> vector<8x1xf32>
    %55 = vector.broadcast %54 : vector<8x1xf32> to vector<8x8xf32>
    %56 = arith.mulf %51, %55 : vector<8x8xf32>
    %cst_40 = arith.constant dense<0.000000e+00> : vector<8x128xf32>
    %57 = tpu.matmul %56, %45, %cst_40 {dimension_numbers = #tpu.dot_dimension_numbers<[1], [0], [0], [1], [0, 0, 1, 1], [], []>} : vector<8x8xf32>, vector<8x128xf32>, vector<8x128xf32> -> vector<8x128xf32>
    %c0_41 = arith.constant 0 : index
    %c256_42 = arith.constant 256 : index
    %58 = vector.load %arg17[%c0_41, %c256_42] : memref<8x512xf32, #tpu.memory_space<vmem>>, vector<8x128xf32>
    tpu.vector_store %arg17[%c0_41, %c256_42], %57 {strides = array<i32>} : memref<8x512xf32, #tpu.memory_space<vmem>>, vector<8x128xf32>,
    %c0_43 = arith.constant 0 : index
    %c384 = arith.constant 384 : index
    %59 = vector.load %arg14[%c0_43, %c384] : memref<8x512xf32, #tpu.memory_space<vmem>>, vector<8x128xf32>
    %c0_44 = arith.constant 0 : index
    %c384_45 = arith.constant 384 : index
    %60 = vector.load %arg15[%c0_44, %c384_45] : memref<8x512xf32, #tpu.memory_space<vmem>>, vector<8x128xf32>
    %c0_46 = arith.constant 0 : index
    %c384_47 = arith.constant 384 : index
    %61 = vector.load %arg16[%c0_46, %c384_47] : memref<8x512xf32, #tpu.memory_space<vmem>>, vector<8x128xf32>
    %cst_48 = arith.constant dense<0.000000e+00> : vector<8x8xf32>
    %62 = tpu.matmul %59, %60, %cst_48 {dimension_numbers = #tpu.dot_dimension_numbers<[1], [1], [0], [0], [0, 0, 1, 0], [], []>} : vector<8x128xf32>, vector<8x128xf32>, vector<8x8xf32> -> vector<8x8xf32>
    %cst_49 = arith.constant dense<0xFF800000> : vector<8xf32>
    %63 = vector.multi_reduction <maximumf>, %62, %cst_49 [1] : vector<8x8xf32> to vector<8xf32>
    %64 = vector.shape_cast %63 : vector<8xf32> to vector<8x1xf32>
    %65 = vector.broadcast %64 : vector<8x1xf32> to vector<8x8xf32>
    %66 = arith.subf %62, %65 : vector<8x8xf32>
    %67 = math.exp %66 : vector<8x8xf32>
    %cst_50 = arith.constant dense<0.000000e+00> : vector<8xf32>
    %68 = vector.multi_reduction <add>, %67, %cst_50 [1] : vector<8x8xf32> to vector<8xf32>
    %69 = vector.shape_cast %68 : vector<8xf32> to vector<8x1xf32>
    %70 = tpu.reciprocal %69 {approx = true} : vector<8x1xf32> -> vector<8x1xf32>
    %71 = vector.broadcast %70 : vector<8x1xf32> to vector<8x8xf32>
    %72 = arith.mulf %67, %71 : vector<8x8xf32>
    %cst_51 = arith.constant dense<0.000000e+00> : vector<8x128xf32>
    %73 = tpu.matmul %72, %61, %cst_51 {dimension_numbers = #tpu.dot_dimension_numbers<[1], [0], [0], [1], [0, 0, 1, 1], [], []>} : vector<8x8xf32>, vector<8x128xf32>, vector<8x128xf32> -> vector<8x128xf32>
    %c0_52 = arith.constant 0 : index
    %c384_53 = arith.constant 384 : index
    %74 = vector.load %arg17[%c0_52, %c384_53] : memref<8x512xf32, #tpu.memory_space<vmem>>, vector<8x128xf32>
    tpu.vector_store %arg17[%c0_52, %c384_53], %73 {strides = array<i32>} : memref<8x512xf32, #tpu.memory_space<vmem>>, vector<8x128xf32>,
    %c0_54 = arith.constant 0 : index
    %c0_55 = arith.constant 0 : index
    %75 = vector.load %arg17[%c0_54, %c0_55] : memref<8x512xf32, #tpu.memory_space<vmem>>, vector<8x512xf32>
    %c0_56 = arith.constant 0 : index
    %c0_57 = arith.constant 0 : index
    %76 = vector.load %arg11[%c0_56, %c0_57] : memref<512x128xf32, #tpu.memory_space<vmem>>, vector<512x128xf32>
    %cst_58 = arith.constant dense<0.000000e+00> : vector<8x128xf32>
    %77 = tpu.matmul %75, %76, %cst_58 {dimension_numbers = #tpu.dot_dimension_numbers<[1], [0], [0], [1], [0, 0, 1, 1], [], []>} : vector<8x512xf32>, vector<512x128xf32>, vector<8x128xf32> -> vector<8x128xf32>
    %c0_59 = arith.constant 0 : index
    %c0_60 = arith.constant 0 : index
    %78 = vector.load %arg12[%c0_59, %c0_60] : memref<1x128xf32, #tpu.memory_space<vmem>>, vector<1x128xf32>
    %79 = vector.broadcast %78 : vector<1x128xf32> to vector<8x128xf32>
    %80 = arith.addf %77, %79 : vector<8x128xf32>
    %c0_61 = arith.constant 0 : index
    %c0_62 = arith.constant 0 : index
    %c0_63 = arith.constant 0 : index
    %81 = vector.load %arg13[%c0_61, %c0_62, %c0_63] : memref<1x8x128xf32, #tpu.memory_space<vmem>>, vector<1x8x128xf32>
    %82 = vector.shape_cast %81 : vector<1x8x128xf32> to vector<8x128xf32>
    %83 = vector.shape_cast %80 : vector<8x128xf32> to vector<1x8x128xf32>
    tpu.vector_store %arg13[%c0_61, %c0_62, %c0_63], %83 {strides = array<i32>} : memref<1x8x128xf32, #tpu.memory_space<vmem>>, vector<1x8x128xf32>,
    return
  }
  func.func @transform_0(%arg0: i32, %arg1: i32) -> (i32, i32, i32) {
    %c0_i32 = arith.constant 0 : i32
    %c0_i32_0 = arith.constant 0 : i32
    return %arg0, %arg1, %c0_i32 : i32, i32, i32
  }
  func.func @transform_1(%arg0: i32, %arg1: i32) -> (i32, i32, i32) {
    %c0_i32 = arith.constant 0 : i32
    %c0_i32_0 = arith.constant 0 : i32
    %c0_i32_1 = arith.constant 0 : i32
    return %arg0, %c0_i32, %c0_i32_0 : i32, i32, i32
  }
  func.func @transform_2(%arg0: i32, %arg1: i32) -> (i32, i32, i32) {
    %c0_i32 = arith.constant 0 : i32
    %c0_i32_0 = arith.constant 0 : i32
    %c0_i32_1 = arith.constant 0 : i32
    return %arg0, %c0_i32, %c0_i32_0 : i32, i32, i32
  }
  func.func @transform_3(%arg0: i32, %arg1: i32) -> (i32, i32) {
    %c0_i32 = arith.constant 0 : i32
    %c0_i32_0 = arith.constant 0 : i32
    %c0_i32_1 = arith.constant 0 : i32
    return %c0_i32, %c0_i32_0 : i32, i32
  }
  func.func @transform_4(%arg0: i32, %arg1: i32) -> (i32, i32) {
    %c0_i32 = arith.constant 0 : i32
    %c0_i32_0 = arith.constant 0 : i32
    %c0_i32_1 = arith.constant 0 : i32
    return %c0_i32, %c0_i32_0 : i32, i32
  }
  func.func @transform_5(%arg0: i32, %arg1: i32) -> (i32, i32) {
    %c0_i32 = arith.constant 0 : i32
    %c0_i32_0 = arith.constant 0 : i32
    %c0_i32_1 = arith.constant 0 : i32
    return %c0_i32, %c0_i32_0 : i32, i32
  }
  func.func @transform_6(%arg0: i32, %arg1: i32) -> (i32, i32) {
    %c0_i32 = arith.constant 0 : i32
    %c0_i32_0 = arith.constant 0 : i32
    %c0_i32_1 = arith.constant 0 : i32
    return %c0_i32, %c0_i32_0 : i32, i32
  }
  func.func @transform_7(%arg0: i32, %arg1: i32) -> (i32, i32) {
    %c0_i32 = arith.constant 0 : i32
    %c0_i32_0 = arith.constant 0 : i32
    %c0_i32_1 = arith.constant 0 : i32
    return %c0_i32, %c0_i32_0 : i32, i32
  }
  func.func @transform_8(%arg0: i32, %arg1: i32) -> (i32, i32) {
    %c0_i32 = arith.constant 0 : i32
    %c0_i32_0 = arith.constant 0 : i32
    %c0_i32_1 = arith.constant 0 : i32
    return %c0_i32, %c0_i32_0 : i32, i32
  }
  func.func @transform_9(%arg0: i32, %arg1: i32) -> (i32, i32) {
    %c0_i32 = arith.constant 0 : i32
    %c0_i32_0 = arith.constant 0 : i32
    %c0_i32_1 = arith.constant 0 : i32
    return %c0_i32, %c0_i32_0 : i32, i32
  }
  func.func @transform_10(%arg0: i32, %arg1: i32) -> (i32, i32) {
    %c0_i32 = arith.constant 0 : i32
    %c0_i32_0 = arith.constant 0 : i32
    %c0_i32_1 = arith.constant 0 : i32
    return %c0_i32, %c0_i32_0 : i32, i32
  }
  func.func @transform_11(%arg0: i32, %arg1: i32) -> (i32, i32, i32) {
    %c0_i32 = arith.constant 0 : i32
    %c0_i32_0 = arith.constant 0 : i32
    return %arg0, %arg1, %c0_i32 : i32, i32, i32
  }
}

</mosaic_0001>

<llo_original>
// kernel: tpu_custom_call.1
$region0: #{tpu_custom_call.1}
  #allocation0 [shape = 'u32[]', space=smem, size = 0x4, offset = 0x4, fixed_abs, tag = 'smem constant byte address 0x4 - core index']
  #allocation1 [shape = 'u32[144,128]{1,0:T(1,128)}', space=vmem, size = 0x12000, scoped, tag = 'internal scratch']
  #allocation2 [shape = 'f32[8,512]{1,0:T(8,128)}', space=vmem, size = 0x4000, scoped, tag = 'scratch operand']
  #allocation3 [shape = 'f32[8,512]{1,0:T(8,128)}', space=vmem, size = 0x4000, scoped, tag = 'scratch operand']
  #allocation4 [shape = 'f32[8,512]{1,0:T(8,128)}', space=vmem, size = 0x4000, scoped, tag = 'scratch operand']
  #allocation5 [shape = 'f32[8,512]{1,0:T(8,128)}', space=vmem, size = 0x4000, scoped, tag = 'scratch operand']
  %s0 = inlined_call_operand.hbm [shape: f32[2,8,32], index: 0, kind: input, shape index: {}]
  %s1 = inlined_call_operand.hbm [shape: f32[2,8,16], index: 1, kind: input, shape index: {}]
  %s2 = inlined_call_operand.hbm [shape: f32[2,8,24], index: 2, kind: input, shape index: {}]
  %s3 = inlined_call_operand.hbm [shape: f32[32,512], index: 3, kind: input, shape index: {}]
  %s4 = inlined_call_operand.vmem [shape: f32[1,512], index: 4, kind: input, shape index: {}]
  %s5 = inlined_call_operand.hbm [shape: f32[16,512], index: 5, kind: input, shape index: {}]
  %s6 = inlined_call_operand.vmem [shape: f32[1,512], index: 6, kind: input, shape index: {}]
  %s7 = inlined_call_operand.hbm [shape: f32[24,512], index: 7, kind: input, shape index: {}]
  %s8 = inlined_call_operand.vmem [shape: f32[1,512], index: 8, kind: input, shape index: {}]
  %s9 = inlined_call_operand.hbm [shape: f32[512,128], index: 9, kind: input, shape index: {}]
  %s10 = inlined_call_operand.vmem [shape: f32[1,128], index: 10, kind: input, shape index: {}]
  %s11 = inlined_call_operand.hbm [shape: f32[2,8,128], index: 11, kind: output, shape index: {}]
  %s12 = sld [smem:[#allocation0]]
  $region109: #{tpu_custom_call.1} parent=0
    _
  %s14 = ssub.s32 1, %s12
  %s15 = scalar_select 0, %s14, %s12
  $region1: #{tpu_custom_call.1} parent=0
    #allocation6 [shape = 'u8[8192]{0}', space=vmem, size = 0x2000, scoped, tag = 'input window, operand 0']
    #allocation7 [shape = 's32[2]{0}', space=sflag, size = 0x8, scoped, tag = 'scoped memory for tpu_custom_call.1']
    #allocation8 [shape = 's32[2]{0}', space=sflag, size = 0x8, scoped, tag = 'scoped memory for tpu_custom_call.1']
    #allocation9 [shape = 'u8[8192]{0}', space=vmem, size = 0x2000, scoped, tag = 'input window, operand 1']
    #allocation10 [shape = 's32[2]{0}', space=sflag, size = 0x8, scoped, tag = 'scoped memory for tpu_custom_call.1']
    #allocation11 [shape = 'u8[8192]{0}', space=vmem, size = 0x2000, scoped, tag = 'input window, operand 2']
    #allocation12 [shape = 'u8[65536]{0}', space=vmem, size = 0x10000, scoped, tag = 'input window, operand 3, single buffered']
    #allocation13 [shape = 's32[1]{0}', space=sflag, size = 0x4, scoped, tag = 'scoped memory for tpu_custom_call.1']
    #allocation14 [shape = 'u8[32768]{0}', space=vmem, size = 0x8000, scoped, tag = 'input window, operand 5, single buffered']
    #allocation15 [shape = 'u8[49152]{0}', space=vmem, size = 0xc000, scoped, tag = 'input window, operand 7, single buffered']
    #allocation16 [shape = 's32[1]{0}', space=sflag, size = 0x4, scoped, tag = 'scoped memory for tpu_custom_call.1']
    #allocation17 [shape = 'u8[262144]{0}', space=vmem, size = 0x40000, scoped, tag = 'input window, operand 9, single buffered']
    #allocation18 [shape = 'u8[8192]{0}', space=vmem, size = 0x2000, scoped, tag = 'output window, operand 0']
    %16 = vsyncpa [#allocation7], 0
    %s17 = scalar_lea.sflag [#allocation7], 1
    %18 = vsyncpa %s17, 0
    %19 = vsyncpa [#allocation10], 0
    %s20 = scalar_lea.sflag [#allocation10], 1
    %21 = vsyncpa %s20, 0
    %22 = vsyncpa [#allocation13], 0
    %23 = vsyncpa [#allocation16], 0
    %24 = vsyncpa [#allocation8], 0
    %s25 = scalar_lea.sflag [#allocation8], 1
    %26 = vsyncpa %s25, 0
    loop: start=0, step=1, limit=4
    $region2: #{tpu_custom_call.1} parent=1 // loop_pre_header
      _
    $region3: #{tpu_custom_call.1} parent=1 // loop_header
      %s28 = sphi 0, %s32
      %p29 = scmp.ge.s32.totalorder %s28, 4
      %s35 = sphi 0, %s47
      %s36 = sphi 0, %s43
      %s37 = sphi 0, %s35
      %s38 = sphi 0, %s36
      %s39 = sphi 0, %s37
      %s40 = sphi 0, %s38
      %s52 = sphi 0, %s54
      %s55 = sphi 0, %s52
      %s56 = sphi 0, %s55
      %s72 = sphi 0, %s56
      %s78 = sphi 0, %s80
      %s81 = sphi 0, %s78
      %s82 = sphi 0, %s81
      %s98 = sphi 0, %s82
      %s104 = sphi 0, %s106
      %s107 = sphi 0, %s104
      %s108 = sphi 0, %s107
      %s124 = sphi 0, %s108
      %s128 = sphi 0, %s128
      %s130 = sphi 0, %s128
      %s131 = sphi 0, %s130
      %s145 = sphi 0, %s131
      %s149 = sphi 0, %s149
      %s151 = sphi 0, %s149
      %s152 = sphi 0, %s151
      %s166 = sphi 0, %s152
      %s170 = sphi 0, %s170
      %s172 = sphi 0, %s170
      %s173 = sphi 0, %s172
      %s187 = sphi 0, %s173
      %s191 = sphi 0, %s191
      %s193 = sphi 0, %s191
      %s194 = sphi 0, %s193
      %s208 = sphi 0, %s194
      %s212 = sphi 0, %s212
      %s214 = sphi 0, %s212
      %s215 = sphi 0, %s214
      %s229 = sphi 0, %s215
      %s233 = sphi 0, %s233
      %s235 = sphi 0, %s233
      %s236 = sphi 0, %s235
      %s250 = sphi 0, %s236
      %s254 = sphi 0, %s254
      %s256 = sphi 0, %s254
      %s257 = sphi 0, %s256
      %s271 = sphi 0, %s257
      %s275 = sphi 0, %s275
      %s277 = sphi 0, %s275
      %s278 = sphi 0, %s277
      %s292 = sphi 0, %s278
      %s300 = sphi 0, %s302
      %s303 = sphi 0, %s300
      %s304 = sphi 0, %s303
      %s320 = sphi 0, %s304
    $region4: #{tpu_custom_call.1} parent=1 // loop_header_branch
      %31 = sbr.rel (%p29) target = $region8
    $region5: #{tpu_custom_call.1} parent=1 // loop_body
      %s33 = ssub.s32 %s28, 1
      %s34 = ssub.s32 %s28, 2
      %s41 = sadd.s32 1, %s36
      %p42 = scmp.ge.s32.totalorder %s41, 1
      %s43 = scalar_select %p42, 0, %s41
      %s44 = sadd.s32 1, %s35
      %s45 = scalar_select %p42, %s44, %s35
      %p46 = scmp.ge.s32.totalorder %s45, 2
      %s47 = scalar_select %p46, 0, %s45
      %s48 = ssub.s32 %s35, %s47
      %s49 = ssub.s32 %s36, %s43
      %s50 = sor.u32 %s48, %s49
      %p51 = scmp.eq.s32.totalorder %s50, 0
      %s53 = sadd.s32 %s52, 1
      %s54 = scalar_select %p51, %s52, %s53
      %p57 = pneg %p51
      %p58 = scmp.eq.s32.totalorder %s28, 1
      %p59 = por %p57, %p58
      %p60 = scmp.ne.s32.totalorder %s52, %s55
      %p61 = scmp.eq.s32.totalorder %s28, 0
      %p62 = por %p60, %p61
      %p63 = scmp.ne.s32.totalorder %s52, %s55
      %p64 = scmp.eq.s32.totalorder %s33, 1
      %p65 = por %p63, %p64
      %p66 = scmp.ne.s32.totalorder %s55, %s56
      %p67 = scmp.eq.s32.totalorder %s33, 0
      %p68 = por %p66, %p67
      %p69 = scmp.ne.s32.totalorder %s55, %s56
      %p70 = scmp.eq.s32.totalorder %s34, 1
      %p71 = por %p69, %p70
      %p73 = scmp.ne.s32.totalorder %s56, %s72
      %p74 = scmp.eq.s32.totalorder %s34, 0
      %p75 = por %p73, %p74
      %s76 = ssub.s32 %s35, %s47
      %p77 = scmp.eq.s32.totalorder %s76, 0
      %s79 = sadd.s32 %s78, 1
      %s80 = scalar_select %p77, %s78, %s79
      %p83 = pneg %p77
      %p84 = scmp.eq.s32.totalorder %s28, 1
      %p85 = por %p83, %p84
      %p86 = scmp.ne.s32.totalorder %s78, %s81
      %p87 = scmp.eq.s32.totalorder %s28, 0
      %p88 = por %p86, %p87
      %p89 = scmp.ne.s32.totalorder %s78, %s81
      %p90 = scmp.eq.s32.totalorder %s33, 1
      %p91 = por %p89, %p90
      %p92 = scmp.ne.s32.totalorder %s81, %s82
      %p93 = scmp.eq.s32.totalorder %s33, 0
      %p94 = por %p92, %p93
      %p95 = scmp.ne.s32.totalorder %s81, %s82
      %p96 = scmp.eq.s32.totalorder %s34, 1
      %p97 = por %p95, %p96
      %p99 = scmp.ne.s32.totalorder %s82, %s98
      %p100 = scmp.eq.s32.totalorder %s34, 0
      %p101 = por %p99, %p100
      %s102 = ssub.s32 %s35, %s47
      %p103 = scmp.eq.s32.totalorder %s102, 0
      %s105 = sadd.s32 %s104, 1
      %s106 = scalar_select %p103, %s104, %s105
      %p109 = pneg %p103
      %p110 = scmp.eq.s32.totalorder %s28, 1
      %p111 = por %p109, %p110
      %p112 = scmp.ne.s32.totalorder %s104, %s107
      %p113 = scmp.eq.s32.totalorder %s28, 0
      %p114 = por %p112, %p113
      %p115 = scmp.ne.s32.totalorder %s104, %s107
      %p116 = scmp.eq.s32.totalorder %s33, 1
      %p117 = por %p115, %p116
      %p118 = scmp.ne.s32.totalorder %s107, %s108
      %p119 = scmp.eq.s32.totalorder %s33, 0
      %p120 = por %p118, %p119
      %p121 = scmp.ne.s32.totalorder %s107, %s108
      %p122 = scmp.eq.s32.totalorder %s34, 1
      %p123 = por %p121, %p122
      %p125 = scmp.ne.s32.totalorder %s108, %s124
      %p126 = scmp.eq.s32.totalorder %s34, 0
      %p127 = por %p125, %p126
      %s129 = sadd.s32 %s128, 1
      %p132 = scmp.eq.s32.totalorder %s28, 1
      %p133 = scmp.ne.s32.totalorder %s128, %s130
      %p134 = scmp.eq.s32.totalorder %s28, 0
      %p135 = por %p133, %p134
      %p136 = scmp.ne.s32.totalorder %s128, %s130
      %p137 = scmp.eq.s32.totalorder %s33, 1
      %p138 = por %p136, %p137
      %p139 = scmp.ne.s32.totalorder %s130, %s131
      %p140 = scmp.eq.s32.totalorder %s33, 0
      %p141 = por %p139, %p140
      %p142 = scmp.ne.s32.totalorder %s130, %s131
      %p143 = scmp.eq.s32.totalorder %s34, 1
      %p144 = por %p142, %p143
      %p146 = scmp.ne.s32.totalorder %s131, %s145
      %p147 = scmp.eq.s32.totalorder %s34, 0
      %p148 = por %p146, %p147
      %s150 = sadd.s32 %s149, 1
      %p153 = scmp.eq.s32.totalorder %s28, 1
      %p154 = scmp.ne.s32.totalorder %s149, %s151
      %p155 = scmp.eq.s32.totalorder %s28, 0
      %p156 = por %p154, %p155
      %p157 = scmp.ne.s32.totalorder %s149, %s151
      %p158 = scmp.eq.s32.totalorder %s33, 1
      %p159 = por %p157, %p158
      %p160 = scmp.ne.s32.totalorder %s151, %s152
      %p161 = scmp.eq.s32.totalorder %s33, 0
      %p162 = por %p160, %p161
      %p163 = scmp.ne.s32.totalorder %s151, %s152
      %p164 = scmp.eq.s32.totalorder %s34, 1
      %p165 = por %p163, %p164
      %p167 = scmp.ne.s32.totalorder %s152, %s166
      %p168 = scmp.eq.s32.totalorder %s34, 0
      %p169 = por %p167, %p168
      %s171 = sadd.s32 %s170, 1
      %p174 = scmp.eq.s32.totalorder %s28, 1
      %p175 = scmp.ne.s32.totalorder %s170, %s172
      %p176 = scmp.eq.s32.totalorder %s28, 0
      %p177 = por %p175, %p176
      %p178 = scmp.ne.s32.totalorder %s170, %s172
      %p179 = scmp.eq.s32.totalorder %s33, 1
      %p180 = por %p178, %p179
      %p181 = scmp.ne.s32.totalorder %s172, %s173
      %p182 = scmp.eq.s32.totalorder %s33, 0
      %p183 = por %p181, %p182
      %p184 = scmp.ne.s32.totalorder %s172, %s173
      %p185 = scmp.eq.s32.totalorder %s34, 1
      %p186 = por %p184, %p185
      %p188 = scmp.ne.s32.totalorder %s173, %s187
      %p189 = scmp.eq.s32.totalorder %s34, 0
      %p190 = por %p188, %p189
      %s192 = sadd.s32 %s191, 1
      %p195 = scmp.eq.s32.totalorder %s28, 1
      %p196 = scmp.ne.s32.totalorder %s191, %s193
      %p197 = scmp.eq.s32.totalorder %s28, 0
      %p198 = por %p196, %p197
      %p199 = scmp.ne.s32.totalorder %s191, %s193
      %p200 = scmp.eq.s32.totalorder %s33, 1
      %p201 = por %p199, %p200
      %p202 = scmp.ne.s32.totalorder %s193, %s194
      %p203 = scmp.eq.s32.totalorder %s33, 0
      %p204 = por %p202, %p203
      %p205 = scmp.ne.s32.totalorder %s193, %s194
      %p206 = scmp.eq.s32.totalorder %s34, 1
      %p207 = por %p205, %p206
      %p209 = scmp.ne.s32.totalorder %s194, %s208
      %p210 = scmp.eq.s32.totalorder %s34, 0
      %p211 = por %p209, %p210
      %s213 = sadd.s32 %s212, 1
      %p216 = scmp.eq.s32.totalorder %s28, 1
      %p217 = scmp.ne.s32.totalorder %s212, %s214
      %p218 = scmp.eq.s32.totalorder %s28, 0
      %p219 = por %p217, %p218
      %p220 = scmp.ne.s32.totalorder %s212, %s214
      %p221 = scmp.eq.s32.totalorder %s33, 1
      %p222 = por %p220, %p221
      %p223 = scmp.ne.s32.totalorder %s214, %s215
      %p224 = scmp.eq.s32.totalorder %s33, 0
      %p225 = por %p223, %p224
      %p226 = scmp.ne.s32.totalorder %s214, %s215
      %p227 = scmp.eq.s32.totalorder %s34, 1
      %p228 = por %p226, %p227
      %p230 = scmp.ne.s32.totalorder %s215, %s229
      %p231 = scmp.eq.s32.totalorder %s34, 0
      %p232 = por %p230, %p231
      %s234 = sadd.s32 %s233, 1
      %p237 = scmp.eq.s32.totalorder %s28, 1
      %p238 = scmp.ne.s32.totalorder %s233, %s235
      %p239 = scmp.eq.s32.totalorder %s28, 0
      %p240 = por %p238, %p239
      %p241 = scmp.ne.s32.totalorder %s233, %s235
      %p242 = scmp.eq.s32.totalorder %s33, 1
      %p243 = por %p241, %p242
      %p244 = scmp.ne.s32.totalorder %s235, %s236
      %p245 = scmp.eq.s32.totalorder %s33, 0
      %p246 = por %p244, %p245
      %p247 = scmp.ne.s32.totalorder %s235, %s236
      %p248 = scmp.eq.s32.totalorder %s34, 1
      %p249 = por %p247, %p248
      %p251 = scmp.ne.s32.totalorder %s236, %s250
      %p252 = scmp.eq.s32.totalorder %s34, 0
      %p253 = por %p251, %p252
      %s255 = sadd.s32 %s254, 1
      %p258 = scmp.eq.s32.totalorder %s28, 1
      %p259 = scmp.ne.s32.totalorder %s254, %s256
      %p260 = scmp.eq.s32.totalorder %s28, 0
      %p261 = por %p259, %p260
      %p262 = scmp.ne.s32.totalorder %s254, %s256
      %p263 = scmp.eq.s32.totalorder %s33, 1
      %p264 = por %p262, %p263
      %p265 = scmp.ne.s32.totalorder %s256, %s257
      %p266 = scmp.eq.s32.totalorder %s33, 0
      %p267 = por %p265, %p266
      %p268 = scmp.ne.s32.totalorder %s256, %s257
      %p269 = scmp.eq.s32.totalorder %s34, 1
      %p270 = por %p268, %p269
      %p272 = scmp.ne.s32.totalorder %s257, %s271
      %p273 = scmp.eq.s32.totalorder %s34, 0
      %p274 = por %p272, %p273
      %s276 = sadd.s32 %s275, 1
      %p279 = scmp.eq.s32.totalorder %s28, 1
      %p280 = scmp.ne.s32.totalorder %s275, %s277
      %p281 = scmp.eq.s32.totalorder %s28, 0
      %p282 = por %p280, %p281
      %p283 = scmp.ne.s32.totalorder %s275, %s277
      %p284 = scmp.eq.s32.totalorder %s33, 1
      %p285 = por %p283, %p284
      %p286 = scmp.ne.s32.totalorder %s277, %s278
      %p287 = scmp.eq.s32.totalorder %s33, 0
      %p288 = por %p286, %p287
      %p289 = scmp.ne.s32.totalorder %s277, %s278
      %p290 = scmp.eq.s32.totalorder %s34, 1
      %p291 = por %p289, %p290
      %p293 = scmp.ne.s32.totalorder %s278, %s292
      %p294 = scmp.eq.s32.totalorder %s34, 0
      %p295 = por %p293, %p294
      %s296 = ssub.s32 %s35, %s47
      %s297 = ssub.s32 %s36, %s43
      %s298 = sor.u32 %s296, %s297
      %p299 = scmp.eq.s32.totalorder %s298, 0
      %s301 = sadd.s32 %s300, 1
      %s302 = scalar_select %p299, %s300, %s301
      %p305 = pneg %p299
      %p306 = scmp.eq.s32.totalorder %s28, 1
      %p307 = por %p305, %p306
      %p308 = scmp.ne.s32.totalorder %s300, %s303
      %p309 = scmp.eq.s32.totalorder %s28, 0
      %p310 = por %p308, %p309
      %p311 = scmp.ne.s32.totalorder %s300, %s303
      %p312 = scmp.eq.s32.totalorder %s33, 1
      %p313 = por %p311, %p312
      %p314 = scmp.ne.s32.totalorder %s303, %s304
      %p315 = scmp.eq.s32.totalorder %s33, 0
      %p316 = por %p314, %p315
      %p317 = scmp.ne.s32.totalorder %s303, %s304
      %p318 = scmp.eq.s32.totalorder %s34, 1
      %p319 = por %p317, %p318
      %p321 = scmp.ne.s32.totalorder %s304, %s320
      %p322 = scmp.eq.s32.totalorder %s34, 0
      %p323 = por %p321, %p322
      %p324 = scmp.le.s32.totalorder 1, %s28
      %p325 = scmp.lt.s32.totalorder %s28, 3
      %p326 = pnand %p324, %p325
      %p327 = pneg %p326
      // Predicated region
      $region9: #{tpu_custom_call.1} parent=5 // pred_check
        _
      $region10: #{tpu_custom_call.1} parent=5 // pred_check_branch
        %329 = sbr.rel (%p326) target = $region12
      $region11: #{tpu_custom_call.1} parent=5 // pred_region
        %s330 = ssub.s32 %s28, 1
        // Predicated region
        $region13: #{tpu_custom_call.1} parent=11 // pred_check
          %p331 = pneg %p141
        $region14: #{tpu_custom_call.1} parent=11 // pred_check_branch
          %333 = sbr.rel (%p331) target = $region16
        $region15: #{tpu_custom_call.1} parent=11 // pred_region
          %s335 = ssub.s32 2048, 2048
          %336 = vsyncadd [#allocation13], %s335
          %s337 = sshll.u32 [#allocation12], 4
          %s338 = int_to_ptr.vmem [resolvable:$true] %s337
          %343 = dma.hbm_to_vmem [thread:$0]  %s3, 2048, %s338, [#allocation13], 512, 512, 32
        $region16: #{tpu_custom_call.1} parent=11 // pred_fallthru
          _
        // Predicated region
        $region17: #{tpu_custom_call.1} parent=11 // pred_check
          %p344 = pneg %p162
        $region18: #{tpu_custom_call.1} parent=11 // pred_check_branch
          %346 = sbr.rel (%p344) target = $region20
        $region19: #{tpu_custom_call.1} parent=11 // pred_region
          _
        $region20: #{tpu_custom_call.1} parent=11 // pred_fallthru
          _
        // Predicated region
        $region21: #{tpu_custom_call.1} parent=11 // pred_check
          %p347 = pneg %p183
        $region22: #{tpu_custom_call.1} parent=11 // pred_check_branch
          %349 = sbr.rel (%p347) target = $region24
        $region23: #{tpu_custom_call.1} parent=11 // pred_region
          %s351 = ssub.s32 1024, 1024
          %352 = vsyncadd [#allocation13], %s351
          %s353 = sshll.u32 [#allocation14], 4
          %s354 = int_to_ptr.vmem [resolvable:$true] %s353
          %359 = dma.hbm_to_vmem [thread:$0]  %s5, 1024, %s354, [#allocation13], 512, 512, 32
        $region24: #{tpu_custom_call.1} parent=11 // pred_fallthru
          _
        // Predicated region
        $region25: #{tpu_custom_call.1} parent=11 // pred_check
          %p360 = pneg %p204
        $region26: #{tpu_custom_call.1} parent=11 // pred_check_branch
          %362 = sbr.rel (%p360) target = $region28
        $region27: #{tpu_custom_call.1} parent=11 // pred_region
          _
        $region28: #{tpu_custom_call.1} parent=11 // pred_fallthru
          _
        // Predicated region
        $region29: #{tpu_custom_call.1} parent=11 // pred_check
          %p363 = pneg %p225
        $region30: #{tpu_custom_call.1} parent=11 // pred_check_branch
          %365 = sbr.rel (%p363) target = $region32
        $region31: #{tpu_custom_call.1} parent=11 // pred_region
          %s367 = ssub.s32 1536, 1536
          %368 = vsyncadd [#allocation16], %s367
          %s369 = sshll.u32 [#allocation15], 4
          %s370 = int_to_ptr.vmem [resolvable:$true] %s369
          %375 = dma.hbm_to_vmem [thread:$0]  %s7, 1536, %s370, [#allocation16], 512, 512, 32
        $region32: #{tpu_custom_call.1} parent=11 // pred_fallthru
          _
        // Predicated region
        $region33: #{tpu_custom_call.1} parent=11 // pred_check
          %p376 = pneg %p246
        $region34: #{tpu_custom_call.1} parent=11 // pred_check_branch
          %378 = sbr.rel (%p376) target = $region36
        $region35: #{tpu_custom_call.1} parent=11 // pred_region
          _
        $region36: #{tpu_custom_call.1} parent=11 // pred_fallthru
          _
        // Predicated region
        $region37: #{tpu_custom_call.1} parent=11 // pred_check
          %p379 = pneg %p267
        $region38: #{tpu_custom_call.1} parent=11 // pred_check_branch
          %381 = sbr.rel (%p379) target = $region40
        $region39: #{tpu_custom_call.1} parent=11 // pred_region
          %s383 = ssub.s32 8192, 8192
          %384 = vsyncadd [#allocation16], %s383
          %s385 = sshll.u32 [#allocation17], 4
          %s386 = int_to_ptr.vmem [resolvable:$true] %s385
          %391 = dma.hbm_to_vmem [thread:$0]  %s9, 8192, %s386, [#allocation16], 128, 128, 8
        $region40: #{tpu_custom_call.1} parent=11 // pred_fallthru
          _
        // Predicated region
        $region41: #{tpu_custom_call.1} parent=11 // pred_check
          %p392 = pneg %p288
        $region42: #{tpu_custom_call.1} parent=11 // pred_check_branch
          %394 = sbr.rel (%p392) target = $region44
        $region43: #{tpu_custom_call.1} parent=11 // pred_region
          _
        $region44: #{tpu_custom_call.1} parent=11 // pred_fallthru
          _
      $region12: #{tpu_custom_call.1} parent=5 // pred_fallthru
        _
      %p395 = scmp.lt.s32.totalorder %s28, 2
      // Predicated region
      $region45: #{tpu_custom_call.1} parent=5 // pred_check
        %p396 = pneg %p395
      $region46: #{tpu_custom_call.1} parent=5 // pred_check_branch
        %398 = sbr.rel (%p396) target = $region48
      $region47: #{tpu_custom_call.1} parent=5 // pred_region
        // Predicated region
        $region49: #{tpu_custom_call.1} parent=47 // pred_check
          %p399 = pneg %p62
        $region50: #{tpu_custom_call.1} parent=47 // pred_check_branch
          %401 = sbr.rel (%p399) target = $region52
        $region51: #{tpu_custom_call.1} parent=47 // pred_region
          %s402 = sand.u32 %s52, 1
          %s403 = scalar_lea.sflag [#allocation7], %s402
          %s404 = sand.u32 %s52, 1
          %s405 = smul.addr %s404, 8
          %s406 = scalar_lea.vmem [#allocation6], %s405
          %s408 = ssub.s32 128, 128
          %409 = vsyncadd %s403, %s408
          %s410 = sadd.s32 %s36, %s35
          %s411 = smul.addr %s410, 128
          %s412 = scalar_lea.hbm %s0, %s411
          %s414 = sshll.u32 %s406, 4
          %s415 = int_to_ptr.vmem [resolvable:$true] %s414
          %417 = dma.hbm_to_vmem [thread:$0]  %s412, 128, %s415, %s403
        $region52: #{tpu_custom_call.1} parent=47 // pred_fallthru
          _
        // Predicated region
        $region53: #{tpu_custom_call.1} parent=47 // pred_check
          %p418 = pneg %p88
        $region54: #{tpu_custom_call.1} parent=47 // pred_check_branch
          %420 = sbr.rel (%p418) target = $region56
        $region55: #{tpu_custom_call.1} parent=47 // pred_region
          %s421 = sand.u32 %s28, 1
          %s422 = scalar_lea.sflag [#allocation10], %s421
          %s423 = sand.u32 %s78, 1
          %s424 = smul.addr %s423, 8
          %s425 = scalar_lea.vmem [#allocation9], %s424
          %s427 = ssub.s32 128, 128
          %428 = vsyncadd %s422, %s427
          %s429 = smul.addr %s35, 128
          %s430 = scalar_lea.hbm %s1, %s429
          %s432 = sshll.u32 %s425, 4
          %s433 = int_to_ptr.vmem [resolvable:$true] %s432
          %435 = dma.hbm_to_vmem [thread:$0]  %s430, 128, %s433, %s422
        $region56: #{tpu_custom_call.1} parent=47 // pred_fallthru
          _
        // Predicated region
        $region57: #{tpu_custom_call.1} parent=47 // pred_check
          %p436 = pneg %p114
        $region58: #{tpu_custom_call.1} parent=47 // pred_check_branch
          %438 = sbr.rel (%p436) target = $region60
        $region59: #{tpu_custom_call.1} parent=47 // pred_region
          %s439 = sand.u32 %s28, 1
          %s440 = scalar_lea.sflag [#allocation10], %s439
          %s441 = sand.u32 %s104, 1
          %s442 = smul.addr %s441, 8
          %s443 = scalar_lea.vmem [#allocation11], %s442
          %s445 = ssub.s32 128, 128
          %446 = vsyncadd %s440, %s445
          %s447 = smul.addr %s35, 128
          %s448 = scalar_lea.hbm %s2, %s447
          %s450 = sshll.u32 %s443, 4
          %s451 = int_to_ptr.vmem [resolvable:$true] %s450
          %453 = dma.hbm_to_vmem [thread:$0]  %s448, 128, %s451, %s440
        $region60: #{tpu_custom_call.1} parent=47 // pred_fallthru
          _
      $region48: #{tpu_custom_call.1} parent=5 // pred_fallthru
        _
      %p454 = scmp.le.s32.totalorder 1, %s28
      %p455 = scmp.lt.s32.totalorder %s28, 3
      %p456 = pnand %p454, %p455
      %p457 = pneg %p456
      // Predicated region
      $region61: #{tpu_custom_call.1} parent=5 // pred_check
        _
      $region62: #{tpu_custom_call.1} parent=5 // pred_check_branch
        %459 = sbr.rel (%p456) target = $region64
      $region63: #{tpu_custom_call.1} parent=5 // pred_region
        %s460 = ssub.s32 %s28, 1
        %s461 = sand.u32 %s55, 1
        %s462 = scalar_lea.sflag [#allocation7], %s461
        %s463 = sand.u32 %s55, 1
        %s464 = smul.addr %s463, 8
        %s465 = scalar_lea.vmem [#allocation6], %s464
        // Predicated region
        $region65: #{tpu_custom_call.1} parent=63 // pred_check
          %p466 = pneg %p68
        $region66: #{tpu_custom_call.1} parent=63 // pred_check_branch
          %468 = sbr.rel (%p466) target = $region68
        $region67: #{tpu_custom_call.1} parent=63 // pred_region
          %469 = dma.done %s462, 128
        $region68: #{tpu_custom_call.1} parent=63 // pred_fallthru
          _
        %s470 = sand.u32 %s33, 1
        %s471 = scalar_lea.sflag [#allocation10], %s470
        %s472 = sand.u32 %s81, 1
        %s473 = smul.addr %s472, 8
        %s474 = scalar_lea.vmem [#allocation9], %s473
        // Predicated region
        $region69: #{tpu_custom_call.1} parent=63 // pred_check
          %p475 = pneg %p94
        $region70: #{tpu_custom_call.1} parent=63 // pred_check_branch
          %477 = sbr.rel (%p475) target = $region72
        $region71: #{tpu_custom_call.1} parent=63 // pred_region
          %478 = dma.done %s471, 128
        $region72: #{tpu_custom_call.1} parent=63 // pred_fallthru
          _
        %s479 = sand.u32 %s33, 1
        %s480 = scalar_lea.sflag [#allocation10], %s479
        %s481 = sand.u32 %s107, 1
        %s482 = smul.addr %s481, 8
        %s483 = scalar_lea.vmem [#allocation11], %s482
        // Predicated region
        $region73: #{tpu_custom_call.1} parent=63 // pred_check
          %p484 = pneg %p120
        $region74: #{tpu_custom_call.1} parent=63 // pred_check_branch
          %486 = sbr.rel (%p484) target = $region76
        $region75: #{tpu_custom_call.1} parent=63 // pred_region
          %487 = dma.done %s480, 128
        $region76: #{tpu_custom_call.1} parent=63 // pred_fallthru
          _
        // Predicated region
        $region77: #{tpu_custom_call.1} parent=63 // pred_check
          %p488 = pneg %p141
        $region78: #{tpu_custom_call.1} parent=63 // pred_check_branch
          %490 = sbr.rel (%p488) target = $region80
        $region79: #{tpu_custom_call.1} parent=63 // pred_region
          %491 = dma.done [#allocation13], 2048
        $region80: #{tpu_custom_call.1} parent=63 // pred_fallthru
          _
        // Predicated region
        $region81: #{tpu_custom_call.1} parent=63 // pred_check
          %p492 = pneg %p183
        $region82: #{tpu_custom_call.1} parent=63 // pred_check_branch
          %494 = sbr.rel (%p492) target = $region84
        $region83: #{tpu_custom_call.1} parent=63 // pred_region
          %495 = dma.done [#allocation13], 1024
        $region84: #{tpu_custom_call.1} parent=63 // pred_fallthru
          _
        // Predicated region
        $region85: #{tpu_custom_call.1} parent=63 // pred_check
          %p496 = pneg %p225
        $region86: #{tpu_custom_call.1} parent=63 // pred_check_branch
          %498 = sbr.rel (%p496) target = $region88
        $region87: #{tpu_custom_call.1} parent=63 // pred_region
          %499 = dma.done [#allocation16], 1536
        $region88: #{tpu_custom_call.1} parent=63 // pred_fallthru
          _
        // Predicated region
        $region89: #{tpu_custom_call.1} parent=63 // pred_check
          %p500 = pneg %p267
        $region90: #{tpu_custom_call.1} parent=63 // pred_check_branch
          %502 = sbr.rel (%p500) target = $region92
        $region91: #{tpu_custom_call.1} parent=63 // pred_region
          %503 = dma.done [#allocation16], 8192
        $region92: #{tpu_custom_call.1} parent=63 // pred_fallthru
          _
        %s504 = sand.u32 %s55, 1
        %s505 = scalar_lea.sflag [#allocation7], %s504
        %s506 = sand.u32 %s55, 1
        %s507 = smul.addr %s506, 8
        %s508 = scalar_lea.vmem [#allocation6], %s507
        %p509 = pneg %p68
        %p510 = pneg %p65
        %s511 = sand.u32 %s33, 1
        %s512 = scalar_lea.sflag [#allocation10], %s511
        %s513 = sand.u32 %s81, 1
        %s514 = smul.addr %s513, 8
        %s515 = scalar_lea.vmem [#allocation9], %s514
        %p516 = pneg %p94
        %p517 = pneg %p91
        %s518 = sand.u32 %s33, 1
        %s519 = scalar_lea.sflag [#allocation10], %s518
        %s520 = sand.u32 %s107, 1
        %s521 = smul.addr %s520, 8
        %s522 = scalar_lea.vmem [#allocation11], %s521
        %p523 = pneg %p120
        %p524 = pneg %p117
        %p525 = pneg %p141
        %p526 = pneg %p138
        %p527 = pneg %p162
        %p528 = pneg %p159
        %p529 = pneg %p183
        %p530 = pneg %p180
        %p531 = pneg %p204
        %p532 = pneg %p201
        %p533 = pneg %p225
        %p534 = pneg %p222
        %p535 = pneg %p246
        %p536 = pneg %p243
        %p537 = pneg %p267
        %p538 = pneg %p264
        %p539 = pneg %p288
        %p540 = pneg %p285
        %p541 = pneg %p316
        %p542 = pneg %p313
        %s543 = sand.u32 %s303, 1
        %s544 = scalar_lea.sflag [#allocation8], %s543
        %s545 = sand.u32 %s303, 1
        %s546 = smul.addr %s545, 8
        %s547 = scalar_lea.vmem [#allocation18], %s546
        %p548 = scmp.eq.s32.totalorder %s38, 0
        // Predicated region
        $region93: #{tpu_custom_call.1} parent=63 // pred_check
          %p549 = pneg %p548
        $region94: #{tpu_custom_call.1} parent=63 // pred_check_branch
          %551 = sbr.rel (%p549) target = $region96
        $region95: #{tpu_custom_call.1} parent=63 // pred_region
          %v552 = vld [vmem:[%s474] sm:$0xff]
          %v553 = vld [vmem:[#allocation14] sm:$0xff]
          %v554 = vld [vmem:[#allocation14 + $0x8] sm:$0xff]
          %v555 = vld [vmem:[#allocation14 + $0x10] sm:$0xff]
          %v556 = vld [vmem:[#allocation14 + $0x18] sm:$0xff]
          %v557 = vld [vmem:[#allocation14 + $0x20] sm:$0xff]
          %v558 = vld [vmem:[#allocation14 + $0x28] sm:$0xff]
          %v559 = vld [vmem:[#allocation14 + $0x30] sm:$0xff]
          %v560 = vld [vmem:[#allocation14 + $0x38] sm:$0xff]
          %v561 = vld [vmem:[%s6] sm:$0xf]
          %v563 = vlaneseq
          %v564 = vshrl.u32 %v563, 7
          %v565 = vsub.s32 0, %v564
          %v566 = vrot.slane %v561, %v565
          %v567 = vlaneseq
          %v568 = vshrl.u32 %v567, 7
          %v569 = vsub.s32 1, %v568
          %v570 = vrot.slane %v561, %v569
          %v571 = vlaneseq
          %v572 = vshrl.u32 %v571, 7
          %v573 = vsub.s32 2, %v572
          %v574 = vrot.slane %v561, %v573
          %v575 = vlaneseq
          %v576 = vshrl.u32 %v575, 7
          %v577 = vsub.s32 3, %v576
          %v578 = vrot.slane %v561, %v577
          %vm583 = vcmask 130048
          %v585 = vsel %vm583, %v552, 0
          %587 = vmatprep.subr.mxu0 %v554
          %588 = vmatpush1.msra.mxu0 %v553
          %589 = vmatprep.subr.mxu0 %v558
          %590 = vmatpush1.msra.mxu0 %v557
          %591 = vmatprep.subr.mxu0 0.0
          %592 = vmatpush1.msra.mxu0 0.0
          %593 = vmatprep.subr.mxu0 0.0
          %594 = vmatpush1.msra.mxu0 0.0
          %595 = vmatprep.subr.mxu0 0.0
          %596 = vmatpush1.msra.mxu0 0.0
          %597 = vmatprep.subr.mxu0 0.0
          %598 = vmatpush1.msra.mxu0 0.0
          %599 = vmatprep.subr.mxu0 0.0
          %600 = vmatpush1.msra.mxu0 0.0
          %601 = vmatprep.subr.mxu0 0.0
          %602 = vmatpush1.msra.mxu0 0.0
          %603 = vmatprep.subr.mxu0 0.0
          %604 = vmatpush1.msra.mxu0 0.0
          %605 = vmatprep.subr.mxu0 0.0
          %606 = vmatpush1.msra.mxu0 0.0
          %607 = vmatprep.subr.mxu0 0.0
          %608 = vmatpush1.msra.mxu0 0.0
          %609 = vmatprep.subr.mxu0 0.0
          %610 = vmatpush1.msra.mxu0 0.0
          %611 = vmatprep.subr.mxu0 0.0
          %612 = vmatpush1.msra.mxu0 0.0
          %613 = vmatprep.subr.mxu0 0.0
          %614 = vmatpush1.msra.mxu0 0.0
          %615 = vmatprep.subr.mxu0 0.0
          %616 = vmatpush1.msra.mxu0 0.0
          %617 = vmatprep.subr.mxu0 0.0
          %618 = vmatpush1.msra.mxu0 0.0
          %619 = vmatprep.subr.mxu0 0.0
          %620 = vmatpush1.msra.mxu0 0.0
          %621 = vmatprep.subr.mxu0 0.0
          %622 = vmatpush1.msra.mxu0 0.0
          %623 = vmatprep.subr.mxu0 0.0
          %624 = vmatpush1.msra.mxu0 0.0
          %625 = vmatprep.subr.mxu0 0.0
          %626 = vmatpush1.msra.mxu0 0.0
          %627 = vmatprep.subr.mxu0 0.0
          %628 = vmatpush1.msra.mxu0 0.0
          %629 = vmatprep.subr.mxu0 0.0
          %630 = vmatpush1.msra.mxu0 0.0
          %631 = vmatprep.subr.mxu0 0.0
          %632 = vmatpush1.msra.mxu0 0.0
          %633 = vmatprep.subr.mxu0 0.0
          %634 = vmatpush1.msra.mxu0 0.0
          %635 = vmatprep.subr.mxu0 0.0
          %636 = vmatpush1.msra.mxu0 0.0
          %637 = vmatprep.subr.mxu0 0.0
          %638 = vmatpush1.msra.mxu0 0.0
          %639 = vmatprep.subr.mxu0 0.0
          %640 = vmatpush1.msra.mxu0 0.0
          %641 = vmatprep.subr.mxu0 0.0
          %642 = vmatpush1.msra.mxu0 0.0
          %643 = vmatprep.subr.mxu0 0.0
          %644 = vmatpush1.msra.mxu0 0.0
          %645 = vmatprep.subr.mxu0 0.0
          %646 = vmatpush1.msra.mxu0 0.0
          %647 = vmatprep.subr.mxu0 0.0
          %648 = vmatpush1.msra.mxu0 0.0
          %649 = vmatprep.subr.mxu0 0.0
          %650 = vmatpush1.msra.mxu0 0.0
          %651 = vmatprep.mubr.f32.mxu0 0.0
          %652 = vmatmul.mubr.f32.gmra.mrb[0].mxu0 %v585
          %v653 = vpop.f32.mrb[0].mxu0
          %v654 = vadd.f32 %v566, %v653
          %v655 = vpop.f32.mrb[0].mxu0
          %v656 = vadd.f32 %v570, %v655
          %657 = vdwg.mxu0
          %658 = vmatprep.subr.mxu0 %v556
          %659 = vmatpush1.msra.mxu0 %v555
          %660 = vmatprep.subr.mxu0 %v560
          %661 = vmatpush1.msra.mxu0 %v559
          %662 = vmatprep.subr.mxu0 0.0
          %663 = vmatpush1.msra.mxu0 0.0
          %664 = vmatprep.subr.mxu0 0.0
          %665 = vmatpush1.msra.mxu0 0.0
          %666 = vmatprep.subr.mxu0 0.0
          %667 = vmatpush1.msra.mxu0 0.0
          %668 = vmatprep.subr.mxu0 0.0
          %669 = vmatpush1.msra.mxu0 0.0
          %670 = vmatprep.subr.mxu0 0.0
          %671 = vmatpush1.msra.mxu0 0.0
          %672 = vmatprep.subr.mxu0 0.0
          %673 = vmatpush1.msra.mxu0 0.0
          %674 = vmatprep.subr.mxu0 0.0
          %675 = vmatpush1.msra.mxu0 0.0
          %676 = vmatprep.subr.mxu0 0.0
          %677 = vmatpush1.msra.mxu0 0.0
          %678 = vmatprep.subr.mxu0 0.0
          %679 = vmatpush1.msra.mxu0 0.0
          %680 = vmatprep.subr.mxu0 0.0
          %681 = vmatpush1.msra.mxu0 0.0
          %682 = vmatprep.subr.mxu0 0.0
          %683 = vmatpush1.msra.mxu0 0.0
          %684 = vmatprep.subr.mxu0 0.0
          %685 = vmatpush1.msra.mxu0 0.0
          %686 = vmatprep.subr.mxu0 0.0
          %687 = vmatpush1.msra.mxu0 0.0
          %688 = vmatprep.subr.mxu0 0.0
          %689 = vmatpush1.msra.mxu0 0.0
          %690 = vmatprep.subr.mxu0 0.0
          %691 = vmatpush1.msra.mxu0 0.0
          %692 = vmatprep.subr.mxu0 0.0
          %693 = vmatpush1.msra.mxu0 0.0
          %694 = vmatprep.subr.mxu0 0.0
          %695 = vmatpush1.msra.mxu0 0.0
          %696 = vmatprep.subr.mxu0 0.0
          %697 = vmatpush1.msra.mxu0 0.0
          %698 = vmatprep.subr.mxu0 0.0
          %699 = vmatpush1.msra.mxu0 0.0
          %700 = vmatprep.subr.mxu0 0.0
          %701 = vmatpush1.msra.mxu0 0.0
          %702 = vmatprep.subr.mxu0 0.0
          %703 = vmatpush1.msra.mxu0 0.0
          %704 = vmatprep.subr.mxu0 0.0
          %705 = vmatpush1.msra.mxu0 0.0
          %706 = vmatprep.subr.mxu0 0.0
          %707 = vmatpush1.msra.mxu0 0.0
          %708 = vmatprep.subr.mxu0 0.0
          %709 = vmatpush1.msra.mxu0 0.0
          %710 = vmatprep.subr.mxu0 0.0
          %711 = vmatpush1.msra.mxu0 0.0
          %712 = vmatprep.subr.mxu0 0.0
          %713 = vmatpush1.msra.mxu0 0.0
          %714 = vmatprep.subr.mxu0 0.0
          %715 = vmatpush1.msra.mxu0 0.0
          %716 = vmatprep.subr.mxu0 0.0
          %717 = vmatpush1.msra.mxu0 0.0
          %718 = vmatprep.subr.mxu0 0.0
          %719 = vmatpush1.msra.mxu0 0.0
          %720 = vmatprep.subr.mxu0 0.0
          %721 = vmatpush1.msra.mxu0 0.0
          %722 = vmatprep.mubr.f32.mxu0 0.0
          %723 = vmatmul.mubr.f32.gmra.mrb[0].mxu0 %v585
          %v724 = vpop.f32.mrb[0].mxu0
          %v725 = vadd.f32 %v574, %v724
          %v726 = vpop.f32.mrb[0].mxu0
          %v727 = vadd.f32 %v578, %v726
          %728 = vdwg.mxu0
          %v729 = vld [vmem:[%s483] sm:$0xff]
          %v730 = vld [vmem:[#allocation15] sm:$0xff]
          %v731 = vld [vmem:[#allocation15 + $0x8] sm:$0xff]
          %v732 = vld [vmem:[#allocation15 + $0x10] sm:$0xff]
          %v733 = vld [vmem:[#allocation15 + $0x18] sm:$0xff]
          %v734 = vld [vmem:[#allocation15 + $0x20] sm:$0xff]
          %v735 = vld [vmem:[#allocation15 + $0x28] sm:$0xff]
          %v736 = vld [vmem:[#allocation15 + $0x30] sm:$0xff]
          %v737 = vld [vmem:[#allocation15 + $0x38] sm:$0xff]
          %v738 = vld [vmem:[#allocation15 + $0x40] sm:$0xff]
          %v739 = vld [vmem:[#allocation15 + $0x48] sm:$0xff]
          %v740 = vld [vmem:[#allocation15 + $0x50] sm:$0xff]
          %v741 = vld [vmem:[#allocation15 + $0x58] sm:$0xff]
          %v742 = vld [vmem:[%s8] sm:$0xf]
          %v744 = vlaneseq
          %v745 = vshrl.u32 %v744, 7
          %v746 = vsub.s32 0, %v745
          %v747 = vrot.slane %v742, %v746
          %v748 = vlaneseq
          %v749 = vshrl.u32 %v748, 7
          %v750 = vsub.s32 1, %v749
          %v751 = vrot.slane %v742, %v750
          %v752 = vlaneseq
          %v753 = vshrl.u32 %v752, 7
          %v754 = vsub.s32 2, %v753
          %v755 = vrot.slane %v742, %v754
          %v756 = vlaneseq
          %v757 = vshrl.u32 %v756, 7
          %v758 = vsub.s32 3, %v757
          %v759 = vrot.slane %v742, %v758
          %vm764 = vcmask 195584
          %v766 = vsel %vm764, %v729, 0
          %768 = vmatprep.subr.mxu0 %v731
          %769 = vmatpush1.msra.mxu0 %v730
          %770 = vmatprep.subr.mxu0 %v735
          %771 = vmatpush1.msra.mxu0 %v734
          %772 = vmatprep.subr.mxu0 %v739
          %773 = vmatpush1.msra.mxu0 %v738
          %774 = vmatprep.subr.mxu0 0.0
          %775 = vmatpush1.msra.mxu0 0.0
          %776 = vmatprep.subr.mxu0 0.0
          %777 = vmatpush1.msra.mxu0 0.0
          %778 = vmatprep.subr.mxu0 0.0
          %779 = vmatpush1.msra.mxu0 0.0
          %780 = vmatprep.subr.mxu0 0.0
          %781 = vmatpush1.msra.mxu0 0.0
          %782 = vmatprep.subr.mxu0 0.0
          %783 = vmatpush1.msra.mxu0 0.0
          %784 = vmatprep.subr.mxu0 0.0
          %785 = vmatpush1.msra.mxu0 0.0
          %786 = vmatprep.subr.mxu0 0.0
          %787 = vmatpush1.msra.mxu0 0.0
          %788 = vmatprep.subr.mxu0 0.0
          %789 = vmatpush1.msra.mxu0 0.0
          %790 = vmatprep.subr.mxu0 0.0
          %791 = vmatpush1.msra.mxu0 0.0
          %792 = vmatprep.subr.mxu0 0.0
          %793 = vmatpush1.msra.mxu0 0.0
          %794 = vmatprep.subr.mxu0 0.0
          %795 = vmatpush1.msra.mxu0 0.0
          %796 = vmatprep.subr.mxu0 0.0
          %797 = vmatpush1.msra.mxu0 0.0
          %798 = vmatprep.subr.mxu0 0.0
          %799 = vmatpush1.msra.mxu0 0.0
          %800 = vmatprep.subr.mxu0 0.0
          %801 = vmatpush1.msra.mxu0 0.0
          %802 = vmatprep.subr.mxu0 0.0
          %803 = vmatpush1.msra.mxu0 0.0
          %804 = vmatprep.subr.mxu0 0.0
          %805 = vmatpush1.msra.mxu0 0.0
          %806 = vmatprep.subr.mxu0 0.0
          %807 = vmatpush1.msra.mxu0 0.0
          %808 = vmatprep.subr.mxu0 0.0
          %809 = vmatpush1.msra.mxu0 0.0
          %810 = vmatprep.subr.mxu0 0.0
          %811 = vmatpush1.msra.mxu0 0.0
          %812 = vmatprep.subr.mxu0 0.0
          %813 = vmatpush1.msra.mxu0 0.0
          %814 = vmatprep.subr.mxu0 0.0
          %815 = vmatpush1.msra.mxu0 0.0
          %816 = vmatprep.subr.mxu0 0.0
          %817 = vmatpush1.msra.mxu0 0.0
          %818 = vmatprep.subr.mxu0 0.0
          %819 = vmatpush1.msra.mxu0 0.0
          %820 = vmatprep.subr.mxu0 0.0
          %821 = vmatpush1.msra.mxu0 0.0
          %822 = vmatprep.subr.mxu0 0.0
          %823 = vmatpush1.msra.mxu0 0.0
          %824 = vmatprep.subr.mxu0 0.0
          %825 = vmatpush1.msra.mxu0 0.0
          %826 = vmatprep.subr.mxu0 0.0
          %827 = vmatpush1.msra.mxu0 0.0
          %828 = vmatprep.subr.mxu0 0.0
          %829 = vmatpush1.msra.mxu0 0.0
          %830 = vmatprep.subr.mxu0 0.0
          %831 = vmatpush1.msra.mxu0 0.0
          %832 = vmatprep.mubr.f32.mxu0 0.0
          %833 = vmatmul.mubr.f32.gmra.mrb[0].mxu0 %v766
          %v834 = vpop.f32.mrb[0].mxu0
          %v835 = vadd.f32 %v747, %v834
          %v836 = vpop.f32.mrb[0].mxu0
          %v837 = vadd.f32 %v751, %v836
          %838 = vdwg.mxu0
          %839 = vmatprep.subr.mxu0 %v733
          %840 = vmatpush1.msra.mxu0 %v732
          %841 = vmatprep.subr.mxu0 %v737
          %842 = vmatpush1.msra.mxu0 %v736
          %843 = vmatprep.subr.mxu0 %v741
          %844 = vmatpush1.msra.mxu0 %v740
          %845 = vmatprep.subr.mxu0 0.0
          %846 = vmatpush1.msra.mxu0 0.0
          %847 = vmatprep.subr.mxu0 0.0
          %848 = vmatpush1.msra.mxu0 0.0
          %849 = vmatprep.subr.mxu0 0.0
          %850 = vmatpush1.msra.mxu0 0.0
          %851 = vmatprep.subr.mxu0 0.0
          %852 = vmatpush1.msra.mxu0 0.0
          %853 = vmatprep.subr.mxu0 0.0
          %854 = vmatpush1.msra.mxu0 0.0
          %855 = vmatprep.subr.mxu0 0.0
          %856 = vmatpush1.msra.mxu0 0.0
          %857 = vmatprep.subr.mxu0 0.0
          %858 = vmatpush1.msra.mxu0 0.0
          %859 = vmatprep.subr.mxu0 0.0
          %860 = vmatpush1.msra.mxu0 0.0
          %861 = vmatprep.subr.mxu0 0.0
          %862 = vmatpush1.msra.mxu0 0.0
          %863 = vmatprep.subr.mxu0 0.0
          %864 = vmatpush1.msra.mxu0 0.0
          %865 = vmatprep.subr.mxu0 0.0
          %866 = vmatpush1.msra.mxu0 0.0
          %867 = vmatprep.subr.mxu0 0.0
          %868 = vmatpush1.msra.mxu0 0.0
          %869 = vmatprep.subr.mxu0 0.0
          %870 = vmatpush1.msra.mxu0 0.0
          %871 = vmatprep.subr.mxu0 0.0
          %872 = vmatpush1.msra.mxu0 0.0
          %873 = vmatprep.subr.mxu0 0.0
          %874 = vmatpush1.msra.mxu0 0.0
          %875 = vmatprep.subr.mxu0 0.0
          %876 = vmatpush1.msra.mxu0 0.0
          %877 = vmatprep.subr.mxu0 0.0
          %878 = vmatpush1.msra.mxu0 0.0
          %879 = vmatprep.subr.mxu0 0.0
          %880 = vmatpush1.msra.mxu0 0.0
          %881 = vmatprep.subr.mxu0 0.0
          %882 = vmatpush1.msra.mxu0 0.0
          %883 = vmatprep.subr.mxu0 0.0
          %884 = vmatpush1.msra.mxu0 0.0
          %885 = vmatprep.subr.mxu0 0.0
          %886 = vmatpush1.msra.mxu0 0.0
          %887 = vmatprep.subr.mxu0 0.0
          %888 = vmatpush1.msra.mxu0 0.0
          %889 = vmatprep.subr.mxu0 0.0
          %890 = vmatpush1.msra.mxu0 0.0
          %891 = vmatprep.subr.mxu0 0.0
          %892 = vmatpush1.msra.mxu0 0.0
          %893 = vmatprep.subr.mxu0 0.0
          %894 = vmatpush1.msra.mxu0 0.0
          %895 = vmatprep.subr.mxu0 0.0
          %896 = vmatpush1.msra.mxu0 0.0
          %897 = vmatprep.subr.mxu0 0.0
          %898 = vmatpush1.msra.mxu0 0.0
          %899 = vmatprep.subr.mxu0 0.0
          %900 = vmatpush1.msra.mxu0 0.0
          %901 = vmatprep.subr.mxu0 0.0
          %902 = vmatpush1.msra.mxu0 0.0
          %903 = vmatprep.mubr.f32.mxu0 0.0
          %904 = vmatmul.mubr.f32.gmra.mrb[0].mxu0 %v766
          %v905 = vpop.f32.mrb[0].mxu0
          %v906 = vadd.f32 %v755, %v905
          %v907 = vpop.f32.mrb[0].mxu0
          %v908 = vadd.f32 %v759, %v907
          %909 = vdwg.mxu0
          %910 = vst [vmem:[#allocation3] sm:$0xff] %v654
          %911 = vst [vmem:[#allocation3 + $0x8] sm:$0xff] %v656
          %912 = vst [vmem:[#allocation3 + $0x10] sm:$0xff] %v725
          %913 = vst [vmem:[#allocation3 + $0x18] sm:$0xff] %v727
          %914 = vst [vmem:[#allocation4] sm:$0xff] %v835
          %915 = vst [vmem:[#allocation4 + $0x8] sm:$0xff] %v837
          %916 = vst [vmem:[#allocation4 + $0x10] sm:$0xff] %v906
          %917 = vst [vmem:[#allocation4 + $0x18] sm:$0xff] %v908
        $region96: #{tpu_custom_call.1} parent=63 // pred_fallthru
          _
        %v918 = vld [vmem:[%s465] sm:$0xff]
        %v919 = vld [vmem:[#allocation12] sm:$0xff]
        %v920 = vld [vmem:[#allocation12 + $0x8] sm:$0xff]
        %v921 = vld [vmem:[#allocation12 + $0x10] sm:$0xff]
        %v922 = vld [vmem:[#allocation12 + $0x18] sm:$0xff]
        %v923 = vld [vmem:[#allocation12 + $0x20] sm:$0xff]
        %v924 = vld [vmem:[#allocation12 + $0x28] sm:$0xff]
        %v925 = vld [vmem:[#allocation12 + $0x30] sm:$0xff]
        %v926 = vld [vmem:[#allocation12 + $0x38] sm:$0xff]
        %v927 = vld [vmem:[#allocation12 + $0x40] sm:$0xff]
        %v928 = vld [vmem:[#allocation12 + $0x48] sm:$0xff]
        %v929 = vld [vmem:[#allocation12 + $0x50] sm:$0xff]
        %v930 = vld [vmem:[#allocation12 + $0x58] sm:$0xff]
        %v931 = vld [vmem:[#allocation12 + $0x60] sm:$0xff]
        %v932 = vld [vmem:[#allocation12 + $0x68] sm:$0xff]
        %v933 = vld [vmem:[#allocation12 + $0x70] sm:$0xff]
        %v934 = vld [vmem:[#allocation12 + $0x78] sm:$0xff]
        %v935 = vld [vmem:[%s4] sm:$0xf]
        %v937 = vlaneseq
        %v938 = vshrl.u32 %v937, 7
        %v939 = vsub.s32 0, %v938
        %v940 = vrot.slane %v935, %v939
        %v941 = vlaneseq
        %v942 = vshrl.u32 %v941, 7
        %v943 = vsub.s32 1, %v942
        %v944 = vrot.slane %v935, %v943
        %v945 = vlaneseq
        %v946 = vshrl.u32 %v945, 7
        %v947 = vsub.s32 2, %v946
        %v948 = vrot.slane %v935, %v947
        %v949 = vlaneseq
        %v950 = vshrl.u32 %v949, 7
        %v951 = vsub.s32 3, %v950
        %v952 = vrot.slane %v935, %v951
        %vm957 = vcmask 261120
        %v959 = vsel %vm957, %v918, 0
        %961 = vmatprep.subr.mxu0 %v920
        %962 = vmatpush1.msra.mxu0 %v919
        %963 = vmatprep.subr.mxu0 %v924
        %964 = vmatpush1.msra.mxu0 %v923
        %965 = vmatprep.subr.mxu0 %v928
        %966 = vmatpush1.msra.mxu0 %v927
        %967 = vmatprep.subr.mxu0 %v932
        %968 = vmatpush1.msra.mxu0 %v931
        %969 = vmatprep.subr.mxu0 0.0
        %970 = vmatpush1.msra.mxu0 0.0
        %971 = vmatprep.subr.mxu0 0.0
        %972 = vmatpush1.msra.mxu0 0.0
        %973 = vmatprep.subr.mxu0 0.0
        %974 = vmatpush1.msra.mxu0 0.0
        %975 = vmatprep.subr.mxu0 0.0
        %976 = vmatpush1.msra.mxu0 0.0
        %977 = vmatprep.subr.mxu0 0.0
        %978 = vmatpush1.msra.mxu0 0.0
        %979 = vmatprep.subr.mxu0 0.0
        %980 = vmatpush1.msra.mxu0 0.0
        %981 = vmatprep.subr.mxu0 0.0
        %982 = vmatpush1.msra.mxu0 0.0
        %983 = vmatprep.subr.mxu0 0.0
        %984 = vmatpush1.msra.mxu0 0.0
        %985 = vmatprep.subr.mxu0 0.0
        %986 = vmatpush1.msra.mxu0 0.0
        %987 = vmatprep.subr.mxu0 0.0
        %988 = vmatpush1.msra.mxu0 0.0
        %989 = vmatprep.subr.mxu0 0.0
        %990 = vmatpush1.msra.mxu0 0.0
        %991 = vmatprep.subr.mxu0 0.0
        %992 = vmatpush1.msra.mxu0 0.0
        %993 = vmatprep.subr.mxu0 0.0
        %994 = vmatpush1.msra.mxu0 0.0
        %995 = vmatprep.subr.mxu0 0.0
        %996 = vmatpush1.msra.mxu0 0.0
        %997 = vmatprep.subr.mxu0 0.0
        %998 = vmatpush1.msra.mxu0 0.0
        %999 = vmatprep.subr.mxu0 0.0
        %1000 = vmatpush1.msra.mxu0 0.0
        %1001 = vmatprep.subr.mxu0 0.0
        %1002 = vmatpush1.msra.mxu0 0.0
        %1003 = vmatprep.subr.mxu0 0.0
        %1004 = vmatpush1.msra.mxu0 0.0
        %1005 = vmatprep.subr.mxu0 0.0
        %1006 = vmatpush1.msra.mxu0 0.0
        %1007 = vmatprep.subr.mxu0 0.0
        %1008 = vmatpush1.msra.mxu0 0.0
        %1009 = vmatprep.subr.mxu0 0.0
        %1010 = vmatpush1.msra.mxu0 0.0
        %1011 = vmatprep.subr.mxu0 0.0
        %1012 = vmatpush1.msra.mxu0 0.0
        %1013 = vmatprep.subr.mxu0 0.0
        %1014 = vmatpush1.msra.mxu0 0.0
        %1015 = vmatprep.subr.mxu0 0.0
        %1016 = vmatpush1.msra.mxu0 0.0
        %1017 = vmatprep.subr.mxu0 0.0
        %1018 = vmatpush1.msra.mxu0 0.0
        %1019 = vmatprep.subr.mxu0 0.0
        %1020 = vmatpush1.msra.mxu0 0.0
        %1021 = vmatprep.subr.mxu0 0.0
        %1022 = vmatpush1.msra.mxu0 0.0
        %1023 = vmatprep.subr.mxu0 0.0
        %1024 = vmatpush1.msra.mxu0 0.0
        %1025 = vmatprep.mubr.f32.mxu0 0.0
        %1026 = vmatmul.mubr.f32.gmra.mrb[0].mxu0 %v959
        %v1027 = vpop.f32.mrb[0].mxu0
        %v1028 = vadd.f32 %v940, %v1027
        %v1029 = vpop.f32.mrb[0].mxu0
        %v1030 = vadd.f32 %v944, %v1029
        %1031 = vdwg.mxu0
        %1032 = vmatprep.subr.mxu0 %v922
        %1033 = vmatpush1.msra.mxu0 %v921
        %1034 = vmatprep.subr.mxu0 %v926
        %1035 = vmatpush1.msra.mxu0 %v925
        %1036 = vmatprep.subr.mxu0 %v930
        %1037 = vmatpush1.msra.mxu0 %v929
        %1038 = vmatprep.subr.mxu0 %v934
        %1039 = vmatpush1.msra.mxu0 %v933
        %1040 = vmatprep.subr.mxu0 0.0
        %1041 = vmatpush1.msra.mxu0 0.0
        %1042 = vmatprep.subr.mxu0 0.0
        %1043 = vmatpush1.msra.mxu0 0.0
        %1044 = vmatprep.subr.mxu0 0.0
        %1045 = vmatpush1.msra.mxu0 0.0
        %1046 = vmatprep.subr.mxu0 0.0
        %1047 = vmatpush1.msra.mxu0 0.0
        %1048 = vmatprep.subr.mxu0 0.0
        %1049 = vmatpush1.msra.mxu0 0.0
        %1050 = vmatprep.subr.mxu0 0.0
        %1051 = vmatpush1.msra.mxu0 0.0
        %1052 = vmatprep.subr.mxu0 0.0
        %1053 = vmatpush1.msra.mxu0 0.0
        %1054 = vmatprep.subr.mxu0 0.0
        %1055 = vmatpush1.msra.mxu0 0.0
        %1056 = vmatprep.subr.mxu0 0.0
        %1057 = vmatpush1.msra.mxu0 0.0
        %1058 = vmatprep.subr.mxu0 0.0
        %1059 = vmatpush1.msra.mxu0 0.0
        %1060 = vmatprep.subr.mxu0 0.0
        %1061 = vmatpush1.msra.mxu0 0.0
        %1062 = vmatprep.subr.mxu0 0.0
        %1063 = vmatpush1.msra.mxu0 0.0
        %1064 = vmatprep.subr.mxu0 0.0
        %1065 = vmatpush1.msra.mxu0 0.0
        %1066 = vmatprep.subr.mxu0 0.0
        %1067 = vmatpush1.msra.mxu0 0.0
        %1068 = vmatprep.subr.mxu0 0.0
        %1069 = vmatpush1.msra.mxu0 0.0
        %1070 = vmatprep.subr.mxu0 0.0
        %1071 = vmatpush1.msra.mxu0 0.0
        %1072 = vmatprep.subr.mxu0 0.0
        %1073 = vmatpush1.msra.mxu0 0.0
        %1074 = vmatprep.subr.mxu0 0.0
        %1075 = vmatpush1.msra.mxu0 0.0
        %1076 = vmatprep.subr.mxu0 0.0
        %1077 = vmatpush1.msra.mxu0 0.0
        %1078 = vmatprep.subr.mxu0 0.0
        %1079 = vmatpush1.msra.mxu0 0.0
        %1080 = vmatprep.subr.mxu0 0.0
        %1081 = vmatpush1.msra.mxu0 0.0
        %1082 = vmatprep.subr.mxu0 0.0
        %1083 = vmatpush1.msra.mxu0 0.0
        %1084 = vmatprep.subr.mxu0 0.0
        %1085 = vmatpush1.msra.mxu0 0.0
        %1086 = vmatprep.subr.mxu0 0.0
        %1087 = vmatpush1.msra.mxu0 0.0
        %1088 = vmatprep.subr.mxu0 0.0
        %1089 = vmatpush1.msra.mxu0 0.0
        %1090 = vmatprep.subr.mxu0 0.0
        %1091 = vmatpush1.msra.mxu0 0.0
        %1092 = vmatprep.subr.mxu0 0.0
        %1093 = vmatpush1.msra.mxu0 0.0
        %1094 = vmatprep.subr.mxu0 0.0
        %1095 = vmatpush1.msra.mxu0 0.0
        %1096 = vmatprep.mubr.f32.mxu0 0.0
        %1097 = vmatmul.mubr.f32.gmra.mrb[0].mxu0 %v959
        %v1098 = vpop.f32.mrb[0].mxu0
        %v1099 = vadd.f32 %v948, %v1098
        %v1100 = vpop.f32.mrb[0].mxu0
        %v1101 = vadd.f32 %v952, %v1100
        %1102 = vdwg.mxu0
        %1103 = vst [vmem:[#allocation2] sm:$0xff] %v1028
        %1104 = vst [vmem:[#allocation2 + $0x8] sm:$0xff] %v1030
        %1105 = vst [vmem:[#allocation2 + $0x10] sm:$0xff] %v1099
        %1106 = vst [vmem:[#allocation2 + $0x18] sm:$0xff] %v1101
        %v1107 = vld [vmem:[#allocation2] sm:$0xff]
        %v1108 = vld [vmem:[#allocation3] sm:$0xff]
        %v1109 = vld [vmem:[#allocation4] sm:$0xff]
        %1110 = vmatprep.subr.mxu0 0.0
        %1111 = vmatpush1.xpose.msra.mxu0 %v1108
        %1112 = vmatprep.subr.mxu0 0.0
        %1113 = vmatpush1.xpose.msra.mxu0 0.0
        %1114 = vmatprep.subr.mxu0 0.0
        %1115 = vmatpush1.xpose.msra.mxu0 0.0
        %1116 = vmatprep.subr.mxu0 0.0
        %1117 = vmatpush1.xpose.msra.mxu0 0.0
        %1118 = vmatprep.subr.mxu0 0.0
        %1119 = vmatpush1.xpose.msra.mxu0 0.0
        %1120 = vmatprep.subr.mxu0 0.0
        %1121 = vmatpush1.xpose.msra.mxu0 0.0
        %1122 = vmatprep.subr.mxu0 0.0
        %1123 = vmatpush1.xpose.msra.mxu0 0.0
        %1124 = vmatprep.subr.mxu0 0.0
        %1125 = vmatpush1.xpose.msra.mxu0 0.0
        %1126 = vmatprep.subr.mxu0 0.0
        %1127 = vmatpush1.xpose.msra.mxu0 0.0
        %1128 = vmatprep.subr.mxu0 0.0
        %1129 = vmatpush1.xpose.msra.mxu0 0.0
        %1130 = vmatprep.subr.mxu0 0.0
        %1131 = vmatpush1.xpose.msra.mxu0 0.0
        %1132 = vmatprep.subr.mxu0 0.0
        %1133 = vmatpush1.xpose.msra.mxu0 0.0
        %1134 = vmatprep.subr.mxu0 0.0
        %1135 = vmatpush1.xpose.msra.mxu0 0.0
        %1136 = vmatprep.subr.mxu0 0.0
        %1137 = vmatpush1.xpose.msra.mxu0 0.0
        %1138 = vmatprep.subr.mxu0 0.0
        %1139 = vmatpush1.xpose.msra.mxu0 0.0
        %1140 = vmatprep.subr.mxu0 0.0
        %1141 = vmatpush1.xpose.msra.mxu0 0.0
        %1142 = vmatprep.subr.mxu0 0.0
        %1143 = vmatpush1.xpose.msra.mxu0 0.0
        %1144 = vmatprep.subr.mxu0 0.0
        %1145 = vmatpush1.xpose.msra.mxu0 0.0
        %1146 = vmatprep.subr.mxu0 0.0
        %1147 = vmatpush1.xpose.msra.mxu0 0.0
        %1148 = vmatprep.subr.mxu0 0.0
        %1149 = vmatpush1.xpose.msra.mxu0 0.0
        %1150 = vmatprep.subr.mxu0 0.0
        %1151 = vmatpush1.xpose.msra.mxu0 0.0
        %1152 = vmatprep.subr.mxu0 0.0
        %1153 = vmatpush1.xpose.msra.mxu0 0.0
        %1154 = vmatprep.subr.mxu0 0.0
        %1155 = vmatpush1.xpose.msra.mxu0 0.0
        %1156 = vmatprep.subr.mxu0 0.0
        %1157 = vmatpush1.xpose.msra.mxu0 0.0
        %1158 = vmatprep.subr.mxu0 0.0
        %1159 = vmatpush1.xpose.msra.mxu0 0.0
        %1160 = vmatprep.subr.mxu0 0.0
        %1161 = vmatpush1.xpose.msra.mxu0 0.0
        %1162 = vmatprep.subr.mxu0 0.0
        %1163 = vmatpush1.xpose.msra.mxu0 0.0
        %1164 = vmatprep.subr.mxu0 0.0
        %1165 = vmatpush1.xpose.msra.mxu0 0.0
        %1166 = vmatprep.subr.mxu0 0.0
        %1167 = vmatpush1.xpose.msra.mxu0 0.0
        %1168 = vmatprep.subr.mxu0 0.0
        %1169 = vmatpush1.xpose.msra.mxu0 0.0
        %1170 = vmatprep.subr.mxu0 0.0
        %1171 = vmatpush1.xpose.msra.mxu0 0.0
        %1172 = vmatprep.subr.mxu0 0.0
        %1173 = vmatpush1.xpose.msra.mxu0 0.0
        %1174 = vmatprep.mubr.f32.mxu0 0.0
        %1175 = vmatmul.mubr.f32.gmra.mrb[0].mxu0 %v1107
        %v1176 = vpop.f32.mrb[0].mxu0
        %v1177 = vadd.f32 0.0, %v1176
        %v1178 = vpop.f32.mrb[0].mxu0
        %1179 = vdwg.mxu0
        %vm1180 = vcmask 64512
        %v1181 = vsel %vm1180, %v1177, -inf
        %1182 = vmax.xlane.f32.xlu0 %v1181
        %v1183 = vpop.xlane.xlu0 %1182
        %v1184 = vsub.f32 %v1177, %v1183
        %v1185 = vmul.f32 %v1184, 1.442695
        %v1186 = vpow.pop %v1185
        %v1187 = vsel %vm1180, %v1186, 0.0
        %1188 = vadd.xlane.f32.xlu0 %v1187
        %v1189 = vpop.xlane.xlu0 %1188
        %v1190 = vrcp.pop %v1189
        %v1191 = vmul.f32 %v1186, %v1190
        %v1193 = vsel %vm1180, %v1191, 0
        %1195 = vmatprep.subr.mxu0 0.0
        %1196 = vmatpush1.msra.mxu0 %v1109
        %1197 = vmatprep.subr.mxu0 0.0
        %1198 = vmatpush1.msra.mxu0 0.0
        %1199 = vmatprep.subr.mxu0 0.0
        %1200 = vmatpush1.msra.mxu0 0.0
        %1201 = vmatprep.subr.mxu0 0.0
        %1202 = vmatpush1.msra.mxu0 0.0
        %1203 = vmatprep.subr.mxu0 0.0
        %1204 = vmatpush1.msra.mxu0 0.0
        %1205 = vmatprep.subr.mxu0 0.0
        %1206 = vmatpush1.msra.mxu0 0.0
        %1207 = vmatprep.subr.mxu0 0.0
        %1208 = vmatpush1.msra.mxu0 0.0
        %1209 = vmatprep.subr.mxu0 0.0
        %1210 = vmatpush1.msra.mxu0 0.0
        %1211 = vmatprep.subr.mxu0 0.0
        %1212 = vmatpush1.msra.mxu0 0.0
        %1213 = vmatprep.subr.mxu0 0.0
        %1214 = vmatpush1.msra.mxu0 0.0
        %1215 = vmatprep.subr.mxu0 0.0
        %1216 = vmatpush1.msra.mxu0 0.0
        %1217 = vmatprep.subr.mxu0 0.0
        %1218 = vmatpush1.msra.mxu0 0.0
        %1219 = vmatprep.subr.mxu0 0.0
        %1220 = vmatpush1.msra.mxu0 0.0
        %1221 = vmatprep.subr.mxu0 0.0
        %1222 = vmatpush1.msra.mxu0 0.0
        %1223 = vmatprep.subr.mxu0 0.0
        %1224 = vmatpush1.msra.mxu0 0.0
        %1225 = vmatprep.subr.mxu0 0.0
        %1226 = vmatpush1.msra.mxu0 0.0
        %1227 = vmatprep.subr.mxu0 0.0
        %1228 = vmatpush1.msra.mxu0 0.0
        %1229 = vmatprep.subr.mxu0 0.0
        %1230 = vmatpush1.msra.mxu0 0.0
        %1231 = vmatprep.subr.mxu0 0.0
        %1232 = vmatpush1.msra.mxu0 0.0
        %1233 = vmatprep.subr.mxu0 0.0
        %1234 = vmatpush1.msra.mxu0 0.0
        %1235 = vmatprep.subr.mxu0 0.0
        %1236 = vmatpush1.msra.mxu0 0.0
        %1237 = vmatprep.subr.mxu0 0.0
        %1238 = vmatpush1.msra.mxu0 0.0
        %1239 = vmatprep.subr.mxu0 0.0
        %1240 = vmatpush1.msra.mxu0 0.0
        %1241 = vmatprep.subr.mxu0 0.0
        %1242 = vmatpush1.msra.mxu0 0.0
        %1243 = vmatprep.subr.mxu0 0.0
        %1244 = vmatpush1.msra.mxu0 0.0
        %1245 = vmatprep.subr.mxu0 0.0
        %1246 = vmatpush1.msra.mxu0 0.0
        %1247 = vmatprep.subr.mxu0 0.0
        %1248 = vmatpush1.msra.mxu0 0.0
        %1249 = vmatprep.subr.mxu0 0.0
        %1250 = vmatpush1.msra.mxu0 0.0
        %1251 = vmatprep.subr.mxu0 0.0
        %1252 = vmatpush1.msra.mxu0 0.0
        %1253 = vmatprep.subr.mxu0 0.0
        %1254 = vmatpush1.msra.mxu0 0.0
        %1255 = vmatprep.subr.mxu0 0.0
        %1256 = vmatpush1.msra.mxu0 0.0
        %1257 = vmatprep.subr.mxu0 0.0
        %1258 = vmatpush1.msra.mxu0 0.0
        %1259 = vmatprep.mubr.f32.mxu0 0.0
        %1260 = vmatmul.mubr.f32.gmra.mrb[0].mxu0 %v1193
        %v1261 = vpop.f32.mrb[0].mxu0
        %v1262 = vadd.f32 0.0, %v1261
        %v1263 = vpop.f32.mrb[0].mxu0
        %1264 = vdwg.mxu0
        %1265 = vst [vmem:[#allocation5] sm:$0xff] %v1262
        %v1266 = vld [vmem:[#allocation2 + $0x8] sm:$0xff]
        %v1267 = vld [vmem:[#allocation3 + $0x8] sm:$0xff]
        %v1268 = vld [vmem:[#allocation4 + $0x8] sm:$0xff]
        %1269 = vmatprep.subr.mxu0 0.0
        %1270 = vmatpush1.xpose.msra.mxu0 %v1267
        %1271 = vmatprep.subr.mxu0 0.0
        %1272 = vmatpush1.xpose.msra.mxu0 0.0
        %1273 = vmatprep.subr.mxu0 0.0
        %1274 = vmatpush1.xpose.msra.mxu0 0.0
        %1275 = vmatprep.subr.mxu0 0.0
        %1276 = vmatpush1.xpose.msra.mxu0 0.0
        %1277 = vmatprep.subr.mxu0 0.0
        %1278 = vmatpush1.xpose.msra.mxu0 0.0
        %1279 = vmatprep.subr.mxu0 0.0
        %1280 = vmatpush1.xpose.msra.mxu0 0.0
        %1281 = vmatprep.subr.mxu0 0.0
        %1282 = vmatpush1.xpose.msra.mxu0 0.0
        %1283 = vmatprep.subr.mxu0 0.0
        %1284 = vmatpush1.xpose.msra.mxu0 0.0
        %1285 = vmatprep.subr.mxu0 0.0
        %1286 = vmatpush1.xpose.msra.mxu0 0.0
        %1287 = vmatprep.subr.mxu0 0.0
        %1288 = vmatpush1.xpose.msra.mxu0 0.0
        %1289 = vmatprep.subr.mxu0 0.0
        %1290 = vmatpush1.xpose.msra.mxu0 0.0
        %1291 = vmatprep.subr.mxu0 0.0
        %1292 = vmatpush1.xpose.msra.mxu0 0.0
        %1293 = vmatprep.subr.mxu0 0.0
        %1294 = vmatpush1.xpose.msra.mxu0 0.0
        %1295 = vmatprep.subr.mxu0 0.0
        %1296 = vmatpush1.xpose.msra.mxu0 0.0
        %1297 = vmatprep.subr.mxu0 0.0
        %1298 = vmatpush1.xpose.msra.mxu0 0.0
        %1299 = vmatprep.subr.mxu0 0.0
        %1300 = vmatpush1.xpose.msra.mxu0 0.0
        %1301 = vmatprep.subr.mxu0 0.0
        %1302 = vmatpush1.xpose.msra.mxu0 0.0
        %1303 = vmatprep.subr.mxu0 0.0
        %1304 = vmatpush1.xpose.msra.mxu0 0.0
        %1305 = vmatprep.subr.mxu0 0.0
        %1306 = vmatpush1.xpose.msra.mxu0 0.0
        %1307 = vmatprep.subr.mxu0 0.0
        %1308 = vmatpush1.xpose.msra.mxu0 0.0
        %1309 = vmatprep.subr.mxu0 0.0
        %1310 = vmatpush1.xpose.msra.mxu0 0.0
        %1311 = vmatprep.subr.mxu0 0.0
        %1312 = vmatpush1.xpose.msra.mxu0 0.0
        %1313 = vmatprep.subr.mxu0 0.0
        %1314 = vmatpush1.xpose.msra.mxu0 0.0
        %1315 = vmatprep.subr.mxu0 0.0
        %1316 = vmatpush1.xpose.msra.mxu0 0.0
        %1317 = vmatprep.subr.mxu0 0.0
        %1318 = vmatpush1.xpose.msra.mxu0 0.0
        %1319 = vmatprep.subr.mxu0 0.0
        %1320 = vmatpush1.xpose.msra.mxu0 0.0
        %1321 = vmatprep.subr.mxu0 0.0
        %1322 = vmatpush1.xpose.msra.mxu0 0.0
        %1323 = vmatprep.subr.mxu0 0.0
        %1324 = vmatpush1.xpose.msra.mxu0 0.0
        %1325 = vmatprep.subr.mxu0 0.0
        %1326 = vmatpush1.xpose.msra.mxu0 0.0
        %1327 = vmatprep.subr.mxu0 0.0
        %1328 = vmatpush1.xpose.msra.mxu0 0.0
        %1329 = vmatprep.subr.mxu0 0.0
        %1330 = vmatpush1.xpose.msra.mxu0 0.0
        %1331 = vmatprep.subr.mxu0 0.0
        %1332 = vmatpush1.xpose.msra.mxu0 0.0
        %1333 = vmatprep.mubr.f32.mxu0 0.0
        %1334 = vmatmul.mubr.f32.gmra.mrb[0].mxu0 %v1266
        %v1335 = vpop.f32.mrb[0].mxu0
        %v1336 = vadd.f32 0.0, %v1335
        %v1337 = vpop.f32.mrb[0].mxu0
        %1338 = vdwg.mxu0
        %v1339 = vsel %vm1180, %v1336, -inf
        %1340 = vmax.xlane.f32.xlu0 %v1339
        %v1341 = vpop.xlane.xlu0 %1340
        %v1342 = vsub.f32 %v1336, %v1341
        %v1343 = vmul.f32 %v1342, 1.442695
        %v1344 = vpow.pop %v1343
        %v1345 = vsel %vm1180, %v1344, 0.0
        %1346 = vadd.xlane.f32.xlu0 %v1345
        %v1347 = vpop.xlane.xlu0 %1346
        %v1348 = vrcp.pop %v1347
        %v1349 = vmul.f32 %v1344, %v1348
        %v1351 = vsel %vm1180, %v1349, 0
        %1353 = vmatprep.subr.mxu0 0.0
        %1354 = vmatpush1.msra.mxu0 %v1268
        %1355 = vmatprep.subr.mxu0 0.0
        %1356 = vmatpush1.msra.mxu0 0.0
        %1357 = vmatprep.subr.mxu0 0.0
        %1358 = vmatpush1.msra.mxu0 0.0
        %1359 = vmatprep.subr.mxu0 0.0
        %1360 = vmatpush1.msra.mxu0 0.0
        %1361 = vmatprep.subr.mxu0 0.0
        %1362 = vmatpush1.msra.mxu0 0.0
        %1363 = vmatprep.subr.mxu0 0.0
        %1364 = vmatpush1.msra.mxu0 0.0
        %1365 = vmatprep.subr.mxu0 0.0
        %1366 = vmatpush1.msra.mxu0 0.0
        %1367 = vmatprep.subr.mxu0 0.0
        %1368 = vmatpush1.msra.mxu0 0.0
        %1369 = vmatprep.subr.mxu0 0.0
        %1370 = vmatpush1.msra.mxu0 0.0
        %1371 = vmatprep.subr.mxu0 0.0
        %1372 = vmatpush1.msra.mxu0 0.0
        %1373 = vmatprep.subr.mxu0 0.0
        %1374 = vmatpush1.msra.mxu0 0.0
        %1375 = vmatprep.subr.mxu0 0.0
        %1376 = vmatpush1.msra.mxu0 0.0
        %1377 = vmatprep.subr.mxu0 0.0
        %1378 = vmatpush1.msra.mxu0 0.0
        %1379 = vmatprep.subr.mxu0 0.0
        %1380 = vmatpush1.msra.mxu0 0.0
        %1381 = vmatprep.subr.mxu0 0.0
        %1382 = vmatpush1.msra.mxu0 0.0
        %1383 = vmatprep.subr.mxu0 0.0
        %1384 = vmatpush1.msra.mxu0 0.0
        %1385 = vmatprep.subr.mxu0 0.0
        %1386 = vmatpush1.msra.mxu0 0.0
        %1387 = vmatprep.subr.mxu0 0.0
        %1388 = vmatpush1.msra.mxu0 0.0
        %1389 = vmatprep.subr.mxu0 0.0
        %1390 = vmatpush1.msra.mxu0 0.0
        %1391 = vmatprep.subr.mxu0 0.0
        %1392 = vmatpush1.msra.mxu0 0.0
        %1393 = vmatprep.subr.mxu0 0.0
        %1394 = vmatpush1.msra.mxu0 0.0
        %1395 = vmatprep.subr.mxu0 0.0
        %1396 = vmatpush1.msra.mxu0 0.0
        %1397 = vmatprep.subr.mxu0 0.0
        %1398 = vmatpush1.msra.mxu0 0.0
        %1399 = vmatprep.subr.mxu0 0.0
        %1400 = vmatpush1.msra.mxu0 0.0
        %1401 = vmatprep.subr.mxu0 0.0
        %1402 = vmatpush1.msra.mxu0 0.0
        %1403 = vmatprep.subr.mxu0 0.0
        %1404 = vmatpush1.msra.mxu0 0.0
        %1405 = vmatprep.subr.mxu0 0.0
        %1406 = vmatpush1.msra.mxu0 0.0
        %1407 = vmatprep.subr.mxu0 0.0
        %1408 = vmatpush1.msra.mxu0 0.0
        %1409 = vmatprep.subr.mxu0 0.0
        %1410 = vmatpush1.msra.mxu0 0.0
        %1411 = vmatprep.subr.mxu0 0.0
        %1412 = vmatpush1.msra.mxu0 0.0
        %1413 = vmatprep.subr.mxu0 0.0
        %1414 = vmatpush1.msra.mxu0 0.0
        %1415 = vmatprep.subr.mxu0 0.0
        %1416 = vmatpush1.msra.mxu0 0.0
        %1417 = vmatprep.mubr.f32.mxu0 0.0
        %1418 = vmatmul.mubr.f32.gmra.mrb[0].mxu0 %v1351
        %v1419 = vpop.f32.mrb[0].mxu0
        %v1420 = vadd.f32 0.0, %v1419
        %v1421 = vpop.f32.mrb[0].mxu0
        %1422 = vdwg.mxu0
        %1423 = vst [vmem:[#allocation5 + $0x8] sm:$0xff] %v1420
        %v1424 = vld [vmem:[#allocation2 + $0x10] sm:$0xff]
        %v1425 = vld [vmem:[#allocation3 + $0x10] sm:$0xff]
        %v1426 = vld [vmem:[#allocation4 + $0x10] sm:$0xff]
        %1427 = vmatprep.subr.mxu0 0.0
        %1428 = vmatpush1.xpose.msra.mxu0 %v1425
        %1429 = vmatprep.subr.mxu0 0.0
        %1430 = vmatpush1.xpose.msra.mxu0 0.0
        %1431 = vmatprep.subr.mxu0 0.0
        %1432 = vmatpush1.xpose.msra.mxu0 0.0
        %1433 = vmatprep.subr.mxu0 0.0
        %1434 = vmatpush1.xpose.msra.mxu0 0.0
        %1435 = vmatprep.subr.mxu0 0.0
        %1436 = vmatpush1.xpose.msra.mxu0 0.0
        %1437 = vmatprep.subr.mxu0 0.0
        %1438 = vmatpush1.xpose.msra.mxu0 0.0
        %1439 = vmatprep.subr.mxu0 0.0
        %1440 = vmatpush1.xpose.msra.mxu0 0.0
        %1441 = vmatprep.subr.mxu0 0.0
        %1442 = vmatpush1.xpose.msra.mxu0 0.0
        %1443 = vmatprep.subr.mxu0 0.0
        %1444 = vmatpush1.xpose.msra.mxu0 0.0
        %1445 = vmatprep.subr.mxu0 0.0
        %1446 = vmatpush1.xpose.msra.mxu0 0.0
        %1447 = vmatprep.subr.mxu0 0.0
        %1448 = vmatpush1.xpose.msra.mxu0 0.0
        %1449 = vmatprep.subr.mxu0 0.0
        %1450 = vmatpush1.xpose.msra.mxu0 0.0
        %1451 = vmatprep.subr.mxu0 0.0
        %1452 = vmatpush1.xpose.msra.mxu0 0.0
        %1453 = vmatprep.subr.mxu0 0.0
        %1454 = vmatpush1.xpose.msra.mxu0 0.0
        %1455 = vmatprep.subr.mxu0 0.0
        %1456 = vmatpush1.xpose.msra.mxu0 0.0
        %1457 = vmatprep.subr.mxu0 0.0
        %1458 = vmatpush1.xpose.msra.mxu0 0.0
        %1459 = vmatprep.subr.mxu0 0.0
        %1460 = vmatpush1.xpose.msra.mxu0 0.0
        %1461 = vmatprep.subr.mxu0 0.0
        %1462 = vmatpush1.xpose.msra.mxu0 0.0
        %1463 = vmatprep.subr.mxu0 0.0
        %1464 = vmatpush1.xpose.msra.mxu0 0.0
        %1465 = vmatprep.subr.mxu0 0.0
        %1466 = vmatpush1.xpose.msra.mxu0 0.0
        %1467 = vmatprep.subr.mxu0 0.0
        %1468 = vmatpush1.xpose.msra.mxu0 0.0
        %1469 = vmatprep.subr.mxu0 0.0
        %1470 = vmatpush1.xpose.msra.mxu0 0.0
        %1471 = vmatprep.subr.mxu0 0.0
        %1472 = vmatpush1.xpose.msra.mxu0 0.0
        %1473 = vmatprep.subr.mxu0 0.0
        %1474 = vmatpush1.xpose.msra.mxu0 0.0
        %1475 = vmatprep.subr.mxu0 0.0
        %1476 = vmatpush1.xpose.msra.mxu0 0.0
        %1477 = vmatprep.subr.mxu0 0.0
        %1478 = vmatpush1.xpose.msra.mxu0 0.0
        %1479 = vmatprep.subr.mxu0 0.0
        %1480 = vmatpush1.xpose.msra.mxu0 0.0
        %1481 = vmatprep.subr.mxu0 0.0
        %1482 = vmatpush1.xpose.msra.mxu0 0.0
        %1483 = vmatprep.subr.mxu0 0.0
        %1484 = vmatpush1.xpose.msra.mxu0 0.0
        %1485 = vmatprep.subr.mxu0 0.0
        %1486 = vmatpush1.xpose.msra.mxu0 0.0
        %1487 = vmatprep.subr.mxu0 0.0
        %1488 = vmatpush1.xpose.msra.mxu0 0.0
        %1489 = vmatprep.subr.mxu0 0.0
        %1490 = vmatpush1.xpose.msra.mxu0 0.0
        %1491 = vmatprep.mubr.f32.mxu0 0.0
        %1492 = vmatmul.mubr.f32.gmra.mrb[0].mxu0 %v1424
        %v1493 = vpop.f32.mrb[0].mxu0
        %v1494 = vadd.f32 0.0, %v1493
        %v1495 = vpop.f32.mrb[0].mxu0
        %1496 = vdwg.mxu0
        %v1497 = vsel %vm1180, %v1494, -inf
        %1498 = vmax.xlane.f32.xlu0 %v1497
        %v1499 = vpop.xlane.xlu0 %1498
        %v1500 = vsub.f32 %v1494, %v1499
        %v1501 = vmul.f32 %v1500, 1.442695
        %v1502 = vpow.pop %v1501
        %v1503 = vsel %vm1180, %v1502, 0.0
        %1504 = vadd.xlane.f32.xlu0 %v1503
        %v1505 = vpop.xlane.xlu0 %1504
        %v1506 = vrcp.pop %v1505
        %v1507 = vmul.f32 %v1502, %v1506
        %v1509 = vsel %vm1180, %v1507, 0
        %1511 = vmatprep.subr.mxu0 0.0
        %1512 = vmatpush1.msra.mxu0 %v1426
        %1513 = vmatprep.subr.mxu0 0.0
        %1514 = vmatpush1.msra.mxu0 0.0
        %1515 = vmatprep.subr.mxu0 0.0
        %1516 = vmatpush1.msra.mxu0 0.0
        %1517 = vmatprep.subr.mxu0 0.0
        %1518 = vmatpush1.msra.mxu0 0.0
        %1519 = vmatprep.subr.mxu0 0.0
        %1520 = vmatpush1.msra.mxu0 0.0
        %1521 = vmatprep.subr.mxu0 0.0
        %1522 = vmatpush1.msra.mxu0 0.0
        %1523 = vmatprep.subr.mxu0 0.0
        %1524 = vmatpush1.msra.mxu0 0.0
        %1525 = vmatprep.subr.mxu0 0.0
        %1526 = vmatpush1.msra.mxu0 0.0
        %1527 = vmatprep.subr.mxu0 0.0
        %1528 = vmatpush1.msra.mxu0 0.0
        %1529 = vmatprep.subr.mxu0 0.0
        %1530 = vmatpush1.msra.mxu0 0.0
        %1531 = vmatprep.subr.mxu0 0.0
        %1532 = vmatpush1.msra.mxu0 0.0
        %1533 = vmatprep.subr.mxu0 0.0
        %1534 = vmatpush1.msra.mxu0 0.0
        %1535 = vmatprep.subr.mxu0 0.0
        %1536 = vmatpush1.msra.mxu0 0.0
        %1537 = vmatprep.subr.mxu0 0.0
        %1538 = vmatpush1.msra.mxu0 0.0
        %1539 = vmatprep.subr.mxu0 0.0
        %1540 = vmatpush1.msra.mxu0 0.0
        %1541 = vmatprep.subr.mxu0 0.0
        %1542 = vmatpush1.msra.mxu0 0.0
        %1543 = vmatprep.subr.mxu0 0.0
        %1544 = vmatpush1.msra.mxu0 0.0
        %1545 = vmatprep.subr.mxu0 0.0
        %1546 = vmatpush1.msra.mxu0 0.0
        %1547 = vmatprep.subr.mxu0 0.0
        %1548 = vmatpush1.msra.mxu0 0.0
        %1549 = vmatprep.subr.mxu0 0.0
        %1550 = vmatpush1.msra.mxu0 0.0
        %1551 = vmatprep.subr.mxu0 0.0
        %1552 = vmatpush1.msra.mxu0 0.0
        %1553 = vmatprep.subr.mxu0 0.0
        %1554 = vmatpush1.msra.mxu0 0.0
        %1555 = vmatprep.subr.mxu0 0.0
        %1556 = vmatpush1.msra.mxu0 0.0
        %1557 = vmatprep.subr.mxu0 0.0
        %1558 = vmatpush1.msra.mxu0 0.0
        %1559 = vmatprep.subr.mxu0 0.0
        %1560 = vmatpush1.msra.mxu0 0.0
        %1561 = vmatprep.subr.mxu0 0.0
        %1562 = vmatpush1.msra.mxu0 0.0
        %1563 = vmatprep.subr.mxu0 0.0
        %1564 = vmatpush1.msra.mxu0 0.0
        %1565 = vmatprep.subr.mxu0 0.0
        %1566 = vmatpush1.msra.mxu0 0.0
        %1567 = vmatprep.subr.mxu0 0.0
        %1568 = vmatpush1.msra.mxu0 0.0
        %1569 = vmatprep.subr.mxu0 0.0
        %1570 = vmatpush1.msra.mxu0 0.0
        %1571 = vmatprep.subr.mxu0 0.0
        %1572 = vmatpush1.msra.mxu0 0.0
        %1573 = vmatprep.subr.mxu0 0.0
        %1574 = vmatpush1.msra.mxu0 0.0
        %1575 = vmatprep.mubr.f32.mxu0 0.0
        %1576 = vmatmul.mubr.f32.gmra.mrb[0].mxu0 %v1509
        %v1577 = vpop.f32.mrb[0].mxu0
        %v1578 = vadd.f32 0.0, %v1577
        %v1579 = vpop.f32.mrb[0].mxu0
        %1580 = vdwg.mxu0
        %1581 = vst [vmem:[#allocation5 + $0x10] sm:$0xff] %v1578
        %v1582 = vld [vmem:[#allocation2 + $0x18] sm:$0xff]
        %v1583 = vld [vmem:[#allocation3 + $0x18] sm:$0xff]
        %v1584 = vld [vmem:[#allocation4 + $0x18] sm:$0xff]
        %1585 = vmatprep.subr.mxu0 0.0
        %1586 = vmatpush1.xpose.msra.mxu0 %v1583
        %1587 = vmatprep.subr.mxu0 0.0
        %1588 = vmatpush1.xpose.msra.mxu0 0.0
        %1589 = vmatprep.subr.mxu0 0.0
        %1590 = vmatpush1.xpose.msra.mxu0 0.0
        %1591 = vmatprep.subr.mxu0 0.0
        %1592 = vmatpush1.xpose.msra.mxu0 0.0
        %1593 = vmatprep.subr.mxu0 0.0
        %1594 = vmatpush1.xpose.msra.mxu0 0.0
        %1595 = vmatprep.subr.mxu0 0.0
        %1596 = vmatpush1.xpose.msra.mxu0 0.0
        %1597 = vmatprep.subr.mxu0 0.0
        %1598 = vmatpush1.xpose.msra.mxu0 0.0
        %1599 = vmatprep.subr.mxu0 0.0
        %1600 = vmatpush1.xpose.msra.mxu0 0.0
        %1601 = vmatprep.subr.mxu0 0.0
        %1602 = vmatpush1.xpose.msra.mxu0 0.0
        %1603 = vmatprep.subr.mxu0 0.0
        %1604 = vmatpush1.xpose.msra.mxu0 0.0
        %1605 = vmatprep.subr.mxu0 0.0
        %1606 = vmatpush1.xpose.msra.mxu0 0.0
        %1607 = vmatprep.subr.mxu0 0.0
        %1608 = vmatpush1.xpose.msra.mxu0 0.0
        %1609 = vmatprep.subr.mxu0 0.0
        %1610 = vmatpush1.xpose.msra.mxu0 0.0
        %1611 = vmatprep.subr.mxu0 0.0
        %1612 = vmatpush1.xpose.msra.mxu0 0.0
        %1613 = vmatprep.subr.mxu0 0.0
        %1614 = vmatpush1.xpose.msra.mxu0 0.0
        %1615 = vmatprep.subr.mxu0 0.0
        %1616 = vmatpush1.xpose.msra.mxu0 0.0
        %1617 = vmatprep.subr.mxu0 0.0
        %1618 = vmatpush1.xpose.msra.mxu0 0.0
        %1619 = vmatprep.subr.mxu0 0.0
        %1620 = vmatpush1.xpose.msra.mxu0 0.0
        %1621 = vmatprep.subr.mxu0 0.0
        %1622 = vmatpush1.xpose.msra.mxu0 0.0
        %1623 = vmatprep.subr.mxu0 0.0
        %1624 = vmatpush1.xpose.msra.mxu0 0.0
        %1625 = vmatprep.subr.mxu0 0.0
        %1626 = vmatpush1.xpose.msra.mxu0 0.0
        %1627 = vmatprep.subr.mxu0 0.0
        %1628 = vmatpush1.xpose.msra.mxu0 0.0
        %1629 = vmatprep.subr.mxu0 0.0
        %1630 = vmatpush1.xpose.msra.mxu0 0.0
        %1631 = vmatprep.subr.mxu0 0.0
        %1632 = vmatpush1.xpose.msra.mxu0 0.0
        %1633 = vmatprep.subr.mxu0 0.0
        %1634 = vmatpush1.xpose.msra.mxu0 0.0
        %1635 = vmatprep.subr.mxu0 0.0
        %1636 = vmatpush1.xpose.msra.mxu0 0.0
        %1637 = vmatprep.subr.mxu0 0.0
        %1638 = vmatpush1.xpose.msra.mxu0 0.0
        %1639 = vmatprep.subr.mxu0 0.0
        %1640 = vmatpush1.xpose.msra.mxu0 0.0
        %1641 = vmatprep.subr.mxu0 0.0
        %1642 = vmatpush1.xpose.msra.mxu0 0.0
        %1643 = vmatprep.subr.mxu0 0.0
        %1644 = vmatpush1.xpose.msra.mxu0 0.0
        %1645 = vmatprep.subr.mxu0 0.0
        %1646 = vmatpush1.xpose.msra.mxu0 0.0
        %1647 = vmatprep.subr.mxu0 0.0
        %1648 = vmatpush1.xpose.msra.mxu0 0.0
        %1649 = vmatprep.mubr.f32.mxu0 0.0
        %1650 = vmatmul.mubr.f32.gmra.mrb[0].mxu0 %v1582
        %v1651 = vpop.f32.mrb[0].mxu0
        %v1652 = vadd.f32 0.0, %v1651
        %v1653 = vpop.f32.mrb[0].mxu0
        %1654 = vdwg.mxu0
        %v1655 = vsel %vm1180, %v1652, -inf
        %1656 = vmax.xlane.f32.xlu0 %v1655
        %v1657 = vpop.xlane.xlu0 %1656
        %v1658 = vsub.f32 %v1652, %v1657
        %v1659 = vmul.f32 %v1658, 1.442695
        %v1660 = vpow.pop %v1659
        %v1661 = vsel %vm1180, %v1660, 0.0
        %1662 = vadd.xlane.f32.xlu0 %v1661
        %v1663 = vpop.xlane.xlu0 %1662
        %v1664 = vrcp.pop %v1663
        %v1665 = vmul.f32 %v1660, %v1664
        %v1667 = vsel %vm1180, %v1665, 0
        %1669 = vmatprep.subr.mxu0 0.0
        %1670 = vmatpush1.msra.mxu0 %v1584
        %1671 = vmatprep.subr.mxu0 0.0
        %1672 = vmatpush1.msra.mxu0 0.0
        %1673 = vmatprep.subr.mxu0 0.0
        %1674 = vmatpush1.msra.mxu0 0.0
        %1675 = vmatprep.subr.mxu0 0.0
        %1676 = vmatpush1.msra.mxu0 0.0
        %1677 = vmatprep.subr.mxu0 0.0
        %1678 = vmatpush1.msra.mxu0 0.0
        %1679 = vmatprep.subr.mxu0 0.0
        %1680 = vmatpush1.msra.mxu0 0.0
        %1681 = vmatprep.subr.mxu0 0.0
        %1682 = vmatpush1.msra.mxu0 0.0
        %1683 = vmatprep.subr.mxu0 0.0
        %1684 = vmatpush1.msra.mxu0 0.0
        %1685 = vmatprep.subr.mxu0 0.0
        %1686 = vmatpush1.msra.mxu0 0.0
        %1687 = vmatprep.subr.mxu0 0.0
        %1688 = vmatpush1.msra.mxu0 0.0
        %1689 = vmatprep.subr.mxu0 0.0
        %1690 = vmatpush1.msra.mxu0 0.0
        %1691 = vmatprep.subr.mxu0 0.0
        %1692 = vmatpush1.msra.mxu0 0.0
        %1693 = vmatprep.subr.mxu0 0.0
        %1694 = vmatpush1.msra.mxu0 0.0
        %1695 = vmatprep.subr.mxu0 0.0
        %1696 = vmatpush1.msra.mxu0 0.0
        %1697 = vmatprep.subr.mxu0 0.0
        %1698 = vmatpush1.msra.mxu0 0.0
        %1699 = vmatprep.subr.mxu0 0.0
        %1700 = vmatpush1.msra.mxu0 0.0
        %1701 = vmatprep.subr.mxu0 0.0
        %1702 = vmatpush1.msra.mxu0 0.0
        %1703 = vmatprep.subr.mxu0 0.0
        %1704 = vmatpush1.msra.mxu0 0.0
        %1705 = vmatprep.subr.mxu0 0.0
        %1706 = vmatpush1.msra.mxu0 0.0
        %1707 = vmatprep.subr.mxu0 0.0
        %1708 = vmatpush1.msra.mxu0 0.0
        %1709 = vmatprep.subr.mxu0 0.0
        %1710 = vmatpush1.msra.mxu0 0.0
        %1711 = vmatprep.subr.mxu0 0.0
        %1712 = vmatpush1.msra.mxu0 0.0
        %1713 = vmatprep.subr.mxu0 0.0
        %1714 = vmatpush1.msra.mxu0 0.0
        %1715 = vmatprep.subr.mxu0 0.0
        %1716 = vmatpush1.msra.mxu0 0.0
        %1717 = vmatprep.subr.mxu0 0.0
        %1718 = vmatpush1.msra.mxu0 0.0
        %1719 = vmatprep.subr.mxu0 0.0
        %1720 = vmatpush1.msra.mxu0 0.0
        %1721 = vmatprep.subr.mxu0 0.0
        %1722 = vmatpush1.msra.mxu0 0.0
        %1723 = vmatprep.subr.mxu0 0.0
        %1724 = vmatpush1.msra.mxu0 0.0
        %1725 = vmatprep.subr.mxu0 0.0
        %1726 = vmatpush1.msra.mxu0 0.0
        %1727 = vmatprep.subr.mxu0 0.0
        %1728 = vmatpush1.msra.mxu0 0.0
        %1729 = vmatprep.subr.mxu0 0.0
        %1730 = vmatpush1.msra.mxu0 0.0
        %1731 = vmatprep.subr.mxu0 0.0
        %1732 = vmatpush1.msra.mxu0 0.0
        %1733 = vmatprep.mubr.f32.mxu0 0.0
        %1734 = vmatmul.mubr.f32.gmra.mrb[0].mxu0 %v1667
        %v1735 = vpop.f32.mrb[0].mxu0
        %v1736 = vadd.f32 0.0, %v1735
        %v1737 = vpop.f32.mrb[0].mxu0
        %1738 = vdwg.mxu0
        %1739 = vst [vmem:[#allocation5 + $0x18] sm:$0xff] %v1736
        %v1740 = vld [vmem:[#allocation5] sm:$0xff]
        %v1741 = vld [vmem:[#allocation5 + $0x8] sm:$0xff]
        %v1742 = vld [vmem:[#allocation5 + $0x10] sm:$0xff]
        %v1743 = vld [vmem:[#allocation5 + $0x18] sm:$0xff]
        %v1744 = vld [vmem:[#allocation17] sm:$0xff]
        %v1745 = vld [vmem:[#allocation17 + $0x8] sm:$0xff]
        %v1746 = vld [vmem:[#allocation17 + $0x10] sm:$0xff]
        %v1747 = vld [vmem:[#allocation17 + $0x18] sm:$0xff]
        %v1748 = vld [vmem:[#allocation17 + $0x20] sm:$0xff]
        %v1749 = vld [vmem:[#allocation17 + $0x28] sm:$0xff]
        %v1750 = vld [vmem:[#allocation17 + $0x30] sm:$0xff]
        %v1751 = vld [vmem:[#allocation17 + $0x38] sm:$0xff]
        %v1752 = vld [vmem:[#allocation17 + $0x40] sm:$0xff]
        %v1753 = vld [vmem:[#allocation17 + $0x48] sm:$0xff]
        %v1754 = vld [vmem:[#allocation17 + $0x50] sm:$0xff]
        %v1755 = vld [vmem:[#allocation17 + $0x58] sm:$0xff]
        %v1756 = vld [vmem:[#allocation17 + $0x60] sm:$0xff]
        %v1757 = vld [vmem:[#allocation17 + $0x68] sm:$0xff]
        %v1758 = vld [vmem:[#allocation17 + $0x70] sm:$0xff]
        %v1759 = vld [vmem:[#allocation17 + $0x78] sm:$0xff]
        %v1760 = vld [vmem:[#allocation17 + $0x80] sm:$0xff]
        %v1761 = vld [vmem:[#allocation17 + $0x88] sm:$0xff]
        %v1762 = vld [vmem:[#allocation17 + $0x90] sm:$0xff]
        %v1763 = vld [vmem:[#allocation17 + $0x98] sm:$0xff]
        %v1764 = vld [vmem:[#allocation17 + $0xa0] sm:$0xff]
        %v1765 = vld [vmem:[#allocation17 + $0xa8] sm:$0xff]
        %v1766 = vld [vmem:[#allocation17 + $0xb0] sm:$0xff]
        %v1767 = vld [vmem:[#allocation17 + $0xb8] sm:$0xff]
        %v1768 = vld [vmem:[#allocation17 + $0xc0] sm:$0xff]
        %v1769 = vld [vmem:[#allocation17 + $0xc8] sm:$0xff]
        %v1770 = vld [vmem:[#allocation17 + $0xd0] sm:$0xff]
        %v1771 = vld [vmem:[#allocation17 + $0xd8] sm:$0xff]
        %v1772 = vld [vmem:[#allocation17 + $0xe0] sm:$0xff]
        %v1773 = vld [vmem:[#allocation17 + $0xe8] sm:$0xff]
        %v1774 = vld [vmem:[#allocation17 + $0xf0] sm:$0xff]
        %v1775 = vld [vmem:[#allocation17 + $0xf8] sm:$0xff]
        %v1776 = vld [vmem:[#allocation17 + $0x100] sm:$0xff]
        %v1777 = vld [vmem:[#allocation17 + $0x108] sm:$0xff]
        %v1778 = vld [vmem:[#allocation17 + $0x110] sm:$0xff]
        %v1779 = vld [vmem:[#allocation17 + $0x118] sm:$0xff]
        %v1780 = vld [vmem:[#allocation17 + $0x120] sm:$0xff]
        %v1781 = vld [vmem:[#allocation17 + $0x128] sm:$0xff]
        %v1782 = vld [vmem:[#allocation17 + $0x130] sm:$0xff]
        %v1783 = vld [vmem:[#allocation17 + $0x138] sm:$0xff]
        %v1784 = vld [vmem:[#allocation17 + $0x140] sm:$0xff]
        %v1785 = vld [vmem:[#allocation17 + $0x148] sm:$0xff]
        %v1786 = vld [vmem:[#allocation17 + $0x150] sm:$0xff]
        %v1787 = vld [vmem:[#allocation17 + $0x158] sm:$0xff]
        %v1788 = vld [vmem:[#allocation17 + $0x160] sm:$0xff]
        %v1789 = vld [vmem:[#allocation17 + $0x168] sm:$0xff]
        %v1790 = vld [vmem:[#allocation17 + $0x170] sm:$0xff]
        %v1791 = vld [vmem:[#allocation17 + $0x178] sm:$0xff]
        %v1792 = vld [vmem:[#allocation17 + $0x180] sm:$0xff]
        %v1793 = vld [vmem:[#allocation17 + $0x188] sm:$0xff]
        %v1794 = vld [vmem:[#allocation17 + $0x190] sm:$0xff]
        %v1795 = vld [vmem:[#allocation17 + $0x198] sm:$0xff]
        %v1796 = vld [vmem:[#allocation17 + $0x1a0] sm:$0xff]
        %v1797 = vld [vmem:[#allocation17 + $0x1a8] sm:$0xff]
        %v1798 = vld [vmem:[#allocation17 + $0x1b0] sm:$0xff]
        %v1799 = vld [vmem:[#allocation17 + $0x1b8] sm:$0xff]
        %v1800 = vld [vmem:[#allocation17 + $0x1c0] sm:$0xff]
        %v1801 = vld [vmem:[#allocation17 + $0x1c8] sm:$0xff]
        %v1802 = vld [vmem:[#allocation17 + $0x1d0] sm:$0xff]
        %v1803 = vld [vmem:[#allocation17 + $0x1d8] sm:$0xff]
        %v1804 = vld [vmem:[#allocation17 + $0x1e0] sm:$0xff]
        %v1805 = vld [vmem:[#allocation17 + $0x1e8] sm:$0xff]
        %v1806 = vld [vmem:[#allocation17 + $0x1f0] sm:$0xff]
        %v1807 = vld [vmem:[#allocation17 + $0x1f8] sm:$0xff]
        %v1808 = vld [vmem:[%s10] sm:$0x1]
        %v1810 = vlaneseq
        %v1811 = vshrl.u32 %v1810, 7
        %v1812 = vsub.s32 0, %v1811
        %v1813 = vrot.slane %v1808, %v1812
        %1815 = vmatprep.subr.mxu0 0.0
        %1816 = vmatpush1.msra.mxu0 %v1744
        %1817 = vmatprep.subr.mxu0 0.0
        %1818 = vmatpush1.msra.mxu0 %v1745
        %1819 = vmatprep.subr.mxu0 0.0
        %1820 = vmatpush1.msra.mxu0 %v1746
        %1821 = vmatprep.subr.mxu0 0.0
        %1822 = vmatpush1.msra.mxu0 %v1747
        %1823 = vmatprep.subr.mxu0 0.0
        %1824 = vmatpush1.msra.mxu0 %v1748
        %1825 = vmatprep.subr.mxu0 0.0
        %1826 = vmatpush1.msra.mxu0 %v1749
        %1827 = vmatprep.subr.mxu0 0.0
        %1828 = vmatpush1.msra.mxu0 %v1750
        %1829 = vmatprep.subr.mxu0 0.0
        %1830 = vmatpush1.msra.mxu0 %v1751
        %1831 = vmatprep.subr.mxu0 0.0
        %1832 = vmatpush1.msra.mxu0 %v1752
        %1833 = vmatprep.subr.mxu0 0.0
        %1834 = vmatpush1.msra.mxu0 %v1753
        %1835 = vmatprep.subr.mxu0 0.0
        %1836 = vmatpush1.msra.mxu0 %v1754
        %1837 = vmatprep.subr.mxu0 0.0
        %1838 = vmatpush1.msra.mxu0 %v1755
        %1839 = vmatprep.subr.mxu0 0.0
        %1840 = vmatpush1.msra.mxu0 %v1756
        %1841 = vmatprep.subr.mxu0 0.0
        %1842 = vmatpush1.msra.mxu0 %v1757
        %1843 = vmatprep.subr.mxu0 0.0
        %1844 = vmatpush1.msra.mxu0 %v1758
        %1845 = vmatprep.subr.mxu0 0.0
        %1846 = vmatpush1.msra.mxu0 %v1759
        %1847 = vmatprep.subr.mxu0 0.0
        %1848 = vmatpush1.msra.mxu0 %v1760
        %1849 = vmatprep.subr.mxu0 0.0
        %1850 = vmatpush1.msra.mxu0 %v1761
        %1851 = vmatprep.subr.mxu0 0.0
        %1852 = vmatpush1.msra.mxu0 %v1762
        %1853 = vmatprep.subr.mxu0 0.0
        %1854 = vmatpush1.msra.mxu0 %v1763
        %1855 = vmatprep.subr.mxu0 0.0
        %1856 = vmatpush1.msra.mxu0 %v1764
        %1857 = vmatprep.subr.mxu0 0.0
        %1858 = vmatpush1.msra.mxu0 %v1765
        %1859 = vmatprep.subr.mxu0 0.0
        %1860 = vmatpush1.msra.mxu0 %v1766
        %1861 = vmatprep.subr.mxu0 0.0
        %1862 = vmatpush1.msra.mxu0 %v1767
        %1863 = vmatprep.subr.mxu0 0.0
        %1864 = vmatpush1.msra.mxu0 %v1768
        %1865 = vmatprep.subr.mxu0 0.0
        %1866 = vmatpush1.msra.mxu0 %v1769
        %1867 = vmatprep.subr.mxu0 0.0
        %1868 = vmatpush1.msra.mxu0 %v1770
        %1869 = vmatprep.subr.mxu0 0.0
        %1870 = vmatpush1.msra.mxu0 %v1771
        %1871 = vmatprep.subr.mxu0 0.0
        %1872 = vmatpush1.msra.mxu0 %v1772
        %1873 = vmatprep.subr.mxu0 0.0
        %1874 = vmatpush1.msra.mxu0 %v1773
        %1875 = vmatprep.subr.mxu0 0.0
        %1876 = vmatpush1.msra.mxu0 %v1774
        %1877 = vmatprep.subr.mxu0 0.0
        %1878 = vmatpush1.msra.mxu0 %v1775
        %1879 = vmatprep.mubr.f32.mxu0 %v1741
        %1880 = vmatmul.mubr.f32.gmra.mrb[0].mxu0 %v1740
        %v1881 = vpop.f32.mrb[0].mxu0
        %v1882 = vadd.f32 %v1813, %v1881
        %v1883 = vpop.f32.mrb[0].mxu0
        %1884 = vdwg.mxu0
        %1885 = vmatprep.subr.mxu0 0.0
        %1886 = vmatpush1.msra.mxu0 %v1776
        %1887 = vmatprep.subr.mxu0 0.0
        %1888 = vmatpush1.msra.mxu0 %v1777
        %1889 = vmatprep.subr.mxu0 0.0
        %1890 = vmatpush1.msra.mxu0 %v1778
        %1891 = vmatprep.subr.mxu0 0.0
        %1892 = vmatpush1.msra.mxu0 %v1779
        %1893 = vmatprep.subr.mxu0 0.0
        %1894 = vmatpush1.msra.mxu0 %v1780
        %1895 = vmatprep.subr.mxu0 0.0
        %1896 = vmatpush1.msra.mxu0 %v1781
        %1897 = vmatprep.subr.mxu0 0.0
        %1898 = vmatpush1.msra.mxu0 %v1782
        %1899 = vmatprep.subr.mxu0 0.0
        %1900 = vmatpush1.msra.mxu0 %v1783
        %1901 = vmatprep.subr.mxu0 0.0
        %1902 = vmatpush1.msra.mxu0 %v1784
        %1903 = vmatprep.subr.mxu0 0.0
        %1904 = vmatpush1.msra.mxu0 %v1785
        %1905 = vmatprep.subr.mxu0 0.0
        %1906 = vmatpush1.msra.mxu0 %v1786
        %1907 = vmatprep.subr.mxu0 0.0
        %1908 = vmatpush1.msra.mxu0 %v1787
        %1909 = vmatprep.subr.mxu0 0.0
        %1910 = vmatpush1.msra.mxu0 %v1788
        %1911 = vmatprep.subr.mxu0 0.0
        %1912 = vmatpush1.msra.mxu0 %v1789
        %1913 = vmatprep.subr.mxu0 0.0
        %1914 = vmatpush1.msra.mxu0 %v1790
        %1915 = vmatprep.subr.mxu0 0.0
        %1916 = vmatpush1.msra.mxu0 %v1791
        %1917 = vmatprep.subr.mxu0 0.0
        %1918 = vmatpush1.msra.mxu0 %v1792
        %1919 = vmatprep.subr.mxu0 0.0
        %1920 = vmatpush1.msra.mxu0 %v1793
        %1921 = vmatprep.subr.mxu0 0.0
        %1922 = vmatpush1.msra.mxu0 %v1794
        %1923 = vmatprep.subr.mxu0 0.0
        %1924 = vmatpush1.msra.mxu0 %v1795
        %1925 = vmatprep.subr.mxu0 0.0
        %1926 = vmatpush1.msra.mxu0 %v1796
        %1927 = vmatprep.subr.mxu0 0.0
        %1928 = vmatpush1.msra.mxu0 %v1797
        %1929 = vmatprep.subr.mxu0 0.0
        %1930 = vmatpush1.msra.mxu0 %v1798
        %1931 = vmatprep.subr.mxu0 0.0
        %1932 = vmatpush1.msra.mxu0 %v1799
        %1933 = vmatprep.subr.mxu0 0.0
        %1934 = vmatpush1.msra.mxu0 %v1800
        %1935 = vmatprep.subr.mxu0 0.0
        %1936 = vmatpush1.msra.mxu0 %v1801
        %1937 = vmatprep.subr.mxu0 0.0
        %1938 = vmatpush1.msra.mxu0 %v1802
        %1939 = vmatprep.subr.mxu0 0.0
        %1940 = vmatpush1.msra.mxu0 %v1803
        %1941 = vmatprep.subr.mxu0 0.0
        %1942 = vmatpush1.msra.mxu0 %v1804
        %1943 = vmatprep.subr.mxu0 0.0
        %1944 = vmatpush1.msra.mxu0 %v1805
        %1945 = vmatprep.subr.mxu0 0.0
        %1946 = vmatpush1.msra.mxu0 %v1806
        %1947 = vmatprep.subr.mxu0 0.0
        %1948 = vmatpush1.msra.mxu0 %v1807
        %1949 = vmatprep.mubr.f32.mxu0 %v1743
        %1950 = vmatmul.mubr.f32.gmra.mrb[0].mxu0 %v1742
        %v1951 = vpop.f32.mrb[0].mxu0
        %v1952 = vadd.f32 %v1882, %v1951
        %v1953 = vpop.f32.mrb[0].mxu0
        %1954 = vdwg.mxu0
        %1955 = vst [vmem:[%s547] sm:$0xff] %v1952
        %s1956 = sand.u32 %s303, 1
        %s1957 = scalar_lea.sflag [#allocation8], %s1956
        %s1958 = sand.u32 %s303, 1
        %s1959 = smul.addr %s1958, 8
        %s1960 = scalar_lea.vmem [#allocation18], %s1959
        // Predicated region
        $region97: #{tpu_custom_call.1} parent=63 // pred_check
          %p1961 = pneg %p313
        $region98: #{tpu_custom_call.1} parent=63 // pred_check_branch
          %1963 = sbr.rel (%p1961) target = $region100
        $region99: #{tpu_custom_call.1} parent=63 // pred_region
          %s1965 = ssub.s32 128, 128
          %1966 = vsyncadd %s1957, %s1965
          %s1967 = sadd.s32 %s38, %s37
          %s1968 = smul.addr %s1967, 128
          %s1969 = scalar_lea.hbm %s11, %s1968
          %s1971 = sshll.u32 %s1960, 4
          %s1972 = int_to_ptr.vmem [resolvable:$true] %s1971
          %1974 = dma.vmem_to_hbm [thread:$0]  %s1972, 128, %s1969, %s1957
        $region100: #{tpu_custom_call.1} parent=63 // pred_fallthru
          _
      $region64: #{tpu_custom_call.1} parent=5 // pred_fallthru
        _
      %p1975 = scmp.le.s32.totalorder 2, %s28
      // Predicated region
      $region101: #{tpu_custom_call.1} parent=5 // pred_check
        %p1976 = pneg %p1975
      $region102: #{tpu_custom_call.1} parent=5 // pred_check_branch
        %1978 = sbr.rel (%p1976) target = $region104
      $region103: #{tpu_custom_call.1} parent=5 // pred_region
        %s1979 = ssub.s32 %s28, 2
        // Predicated region
        $region105: #{tpu_custom_call.1} parent=103 // pred_check
          %p1980 = pneg %p319
        $region106: #{tpu_custom_call.1} parent=103 // pred_check_branch
          %1982 = sbr.rel (%p1980) target = $region108
        $region107: #{tpu_custom_call.1} parent=103 // pred_region
          %s1983 = sand.u32 %s304, 1
          %s1984 = scalar_lea.sflag [#allocation8], %s1983
          %s1985 = sand.u32 %s304, 1
          %s1986 = smul.addr %s1985, 8
          %s1987 = scalar_lea.vmem [#allocation18], %s1986
          %1988 = dma.done %s1984, 128
        $region108: #{tpu_custom_call.1} parent=103 // pred_fallthru
          _
      $region104: #{tpu_custom_call.1} parent=5 // pred_fallthru
        _
    $region6: #{tpu_custom_call.1} parent=1 // loop_footer
      %s32 = sadd.s32 1, %s28
    $region7: #{tpu_custom_call.1} parent=1 // loop_footer_branch
      %27 = sbr.rel target = $region3
    $region8: #{tpu_custom_call.1} parent=1 // loop_exit
      _
    %1989 = vsyncpa [#allocation7], 1
    %s1990 = scalar_lea.sflag [#allocation7], 1
    %1991 = vsyncpa %s1990, 1
    %1992 = vsyncpa [#allocation10], 1
    %s1993 = scalar_lea.sflag [#allocation10], 1
    %1994 = vsyncpa %s1993, 1
    %1995 = vsyncpa [#allocation13], 1
    %1996 = vsyncpa [#allocation16], 1
    %1997 = vsyncpa [#allocation8], 1
    %s1998 = scalar_lea.sflag [#allocation8], 1
    %1999 = vsyncpa %s1998, 1

</llo_original>
